<compile_context>
chip_gen: v6e
topology: v6e:2x2x1
jax: 0.10.0
libtpu: 0.0.40
codegen_flags: <defaults>
</compile_context>

<pallas_src>
import functools

import jax
import jax.numpy as jnp
from jax.experimental import pallas as pl
from jax.experimental.pallas import tpu as pltpu


def _encoder_kernel(v_ref, l_ref,
                    w1v_ref, b1v_ref, w2v_ref, b2v_ref,
                    w1l_ref, b1l_ref, w2l_ref, b2l_ref,
                    a_ref, vn_ref):
    num_layers = w1v_ref.shape[0]
    bt, nv, d = v_ref.shape
    nl = l_ref.shape[1]
    scale = 1.0 / jnp.sqrt(jnp.float32(d))

    def ffn(x, w1, b1, w2, b2):
        h = jnp.maximum(jnp.dot(x, w1, preferred_element_type=jnp.float32) + b1, 0.0)
        return jnp.dot(h, w2, preferred_element_type=jnp.float32) + b2

    # Flatten batch into the sublane/M axis so FFN matmuls see (bt*N, D).
    l_flat = l_ref[...].reshape(bt * nl, d)
    v_flat = v_ref[...].reshape(bt * nv, d)     # carried across layers (never leaves VMEM)

    a3 = None
    vn3 = None
    for layer in range(num_layers):             # static unroll (num_layers == 3)
        w1v, b1v = w1v_ref[layer], b1v_ref[layer]
        w2v, b2v = w2v_ref[layer], b2v_ref[layer]
        w1l, b1l = w1l_ref[layer], b1l_ref[layer]
        w2l, b2l = w2l_ref[layer], b2l_ref[layer]

        fvv = ffn(v_flat, w1v, b1v, w2v, b2v)                 # ffn_V(V): (bt*Nv, D)
        x = jnp.concatenate([v_flat, l_flat], axis=0)         # row-stack: single L-FFN pass
        fl = ffn(x, w1l, b1l, w2l, b2l)                       # (bt*(Nv+Nl), D)
        flv = fl[: bt * nv]                                   # ffn_L(V)
        fll = fl[bt * nv:]                                    # ffn_L(L)

        fvv3 = fvv.reshape(bt, nv, d)
        flv3 = flv.reshape(bt, nv, d)
        fll3 = fll.reshape(bt, nl, d)

        k3 = jnp.concatenate([fll3, flv3], axis=1)            # keys:   (bt, Nl+Nv, D)
        kv3 = jnp.concatenate([fll3, fvv3], axis=1)           # values: (bt, Nl+Nv, D)

        # A = [A_LV | A_VV] in one batched matmul contracting last dims (no .T).
        a3 = jnp.einsum('bqd,bkd->bqk', fvv3, k3,
                        preferred_element_type=jnp.float32) * scale   # (bt, Nv, Nl+Nv)

        # torch: F.softmax(A, dim=1) -> softmax over the Nv (query) axis.
        m = jnp.max(a3, axis=1, keepdims=True)
        e = jnp.exp(a3 - m)
        s = jnp.sum(e, axis=1, keepdims=True)
        # approx=True would move this to the (otherwise idle) EUP slot; kept exact
        # here to preserve the tight 1e-4 parity check against the JAX reference.
        p = e * pl.reciprocal(s, approx=False)

        vn3 = jnp.einsum('bqk,bkd->bqd', p, kv3,
                         preferred_element_type=jnp.float32)  # (bt, Nv, D)
        v_flat = vn3.reshape(bt * nv, d)

    a_ref[...] = a3        # only the final layer's A leaves the kernel
    vn_ref[...] = vn3


def _pick_block_b(B, max_bt=8):
    """Largest divisor of B that is <= max_bt while keeping >=2 grid steps (when B>=2)."""
    cap = min(max_bt, B if B < 2 else max(1, B // 2))
    for bt in range(cap, 0, -1):
        if B % bt == 0:
            return bt
    return 1


def _interaction_encoder(V, L, stacked_params, block_b=None):
    """InteractionEncoder.forward.  V:(B,Nv,D), L:(B,Nl,D). Returns (V_final, A_last)."""
    B, Nv, D = V.shape
    Nl = L.shape[1]
    w1v, b1v, w2v, b2v, w1l, b1l, w2l, b2l = stacked_params
    num_layers, _, H = w1v.shape

    bt = block_b if block_b is not None else _pick_block_b(B)
    assert B % bt == 0, "batch must be divisible by the batch block"
    nb = B // bt

    seq_map = lambda b: (b, 0, 0)
    full_map = lambda b: (0, 0, 0)   # weights: constant block across the grid

    grid_spec = pltpu.PrefetchScalarGridSpec(
        num_scalar_prefetch=0,
        grid=(nb,),
        in_specs=[
            pl.BlockSpec((bt, Nv, D), seq_map),              # V
            pl.BlockSpec((bt, Nl, D), seq_map),              # L
            pl.BlockSpec((num_layers, D, H), full_map),      # W1 of ffn_V (stacked)
            pl.BlockSpec((num_layers, 1, H), full_map),      # b1 of ffn_V
            pl.BlockSpec((num_layers, H, D), full_map),      # W2 of ffn_V
            pl.BlockSpec((num_layers, 1, D), full_map),      # b2 of ffn_V
            pl.BlockSpec((num_layers, D, H), full_map),      # W1 of ffn_L
            pl.BlockSpec((num_layers, 1, H), full_map),      # b1 of ffn_L
            pl.BlockSpec((num_layers, H, D), full_map),      # W2 of ffn_L
            pl.BlockSpec((num_layers, 1, D), full_map),      # b2 of ffn_L
        ],
        out_specs=[
            pl.BlockSpec((bt, Nv, Nl + Nv), seq_map),        # A (final layer only)
            pl.BlockSpec((bt, Nv, D), seq_map),              # V_final
        ],
    )

    A, V_out = pl.pallas_call(
        _encoder_kernel,
        out_shape=(jax.ShapeDtypeStruct((B, Nv, Nl + Nv), jnp.float32),
                   jax.ShapeDtypeStruct((B, Nv, D), jnp.float32)),
        grid_spec=grid_spec,
        compiler_params=pltpu.CompilerParams(
            dimension_semantics=("parallel",)),
    )(V, L, w1v, b1v, w2v, b2v, w1l, b1l, w2l, b2l)
    return V_out, A


interaction_encoder = jax.jit(_interaction_encoder, static_argnames=("block_b",))


# ---------------- deterministic parameter init (stacked over layers) ----------------
def init_encoder_params(key, input_dim, hidden_dim, num_layers=3):
    def init_ffn(k):
        k1, k2, k3, k4 = jax.random.split(k, 4)
        s1 = 1.0 / jnp.sqrt(jnp.float32(input_dim))
        s2 = 1.0 / jnp.sqrt(jnp.float32(hidden_dim))
        w1 = jax.random.uniform(k1, (input_dim, hidden_dim), jnp.float32, -s1, s1)
        b1 = jax.random.uniform(k2, (1, hidden_dim), jnp.float32, -s1, s1)
        w2 = jax.random.uniform(k3, (hidden_dim, input_dim), jnp.float32, -s2, s2)
        b2 = jax.random.uniform(k4, (1, input_dim), jnp.float32, -s2, s2)
        return w1, b1, w2, b2

    per_layer = []
    for lk in jax.random.split(key, num_layers):
        kv, kl = jax.random.split(lk)
        per_layer.append(tuple(init_ffn(kv)) + tuple(init_ffn(kl)))   # 8-tuple per layer
    # Stack each of the 8 tensors along a leading num_layers axis.
    return tuple(jnp.stack([layer[i] for layer in per_layer]) for i in range(8))


# ---------------- pure-JAX reference (for correctness check) ----------------
def _ffn_ref(x, w1, b1, w2, b2):
    return jnp.maximum(x @ w1 + b1, 0.0) @ w2 + b2


def _encoder_ref(V, L, stacked_params):
    w1v, b1v, w2v, b2v, w1l, b1l, w2l, b2l = stacked_params
    A = None
    for i in range(w1v.shape[0]):
        fvv = _ffn_ref(V, w1v[i], b1v[i], w2v[i], b2v[i])
        fll = _ffn_ref(L, w1l[i], b1l[i], w2l[i], b2l[i])
        flv = _ffn_ref(V, w1l[i], b1l[i], w2l[i], b2l[i])
        scale = jnp.sqrt(jnp.float32(V.shape[-1]))
        a_lv = jnp.einsum('bnd,bmd->bnm', fvv, fll) / scale
        a_vv = jnp.einsum('bnd,bmd->bnm', fvv, flv) / scale
        A = jnp.concatenate([a_lv, a_vv], axis=-1)
        P = jax.nn.softmax(A, axis=1)
        kv = jnp.concatenate([fll, fvv], axis=1)
        V = jnp.einsum('bnk,bkd->bnd', P, kv)
    return V, A


if __name__ == "__main__":
    B, Nv, Nl, D, H = 2, 8, 8, 32, 32
    key = jax.random.PRNGKey(0)
    kv, kl, kp = jax.random.split(key, 3)
    V = jax.random.normal(kv, (B, Nv, D), jnp.float32)
    L = jax.random.normal(kl, (B, Nl, D), jnp.float32)
    params = init_encoder_params(kp, D, H, num_layers=3)

    V_out, A_out = interaction_encoder(V, L, params)
    V_out = jax.block_until_ready(V_out)
    A_out = jax.block_until_ready(A_out)

    V_ref, A_ref = _encoder_ref(V, L, params)
    assert V_out.shape == (B, Nv, D) and A_out.shape == (B, Nv, Nl + Nv)
    assert jnp.allclose(V_out, V_ref, atol=1e-4, rtol=1e-4)
    assert jnp.allclose(A_out, A_ref, atol=1e-4, rtol=1e-4)

    print("KERNEL_OK")
</pallas_src>

<mosaic_0001>
module attributes {stable_mosaic.version = 11 : i64} {
  func.func @_encoder_kernel(%arg0: i32, %arg1: memref<1x8x32xf32, #tpu.memory_space<vmem>>, %arg2: memref<1x8x32xf32, #tpu.memory_space<vmem>>, %arg3: memref<3x32x32xf32, #tpu.memory_space<vmem>>, %arg4: memref<3x1x32xf32, #tpu.memory_space<vmem>>, %arg5: memref<3x32x32xf32, #tpu.memory_space<vmem>>, %arg6: memref<3x1x32xf32, #tpu.memory_space<vmem>>, %arg7: memref<3x32x32xf32, #tpu.memory_space<vmem>>, %arg8: memref<3x1x32xf32, #tpu.memory_space<vmem>>, %arg9: memref<3x32x32xf32, #tpu.memory_space<vmem>>, %arg10: memref<3x1x32xf32, #tpu.memory_space<vmem>>, %arg11: memref<1x8x16xf32, #tpu.memory_space<vmem>>, %arg12: memref<1x8x32xf32, #tpu.memory_space<vmem>>) attributes {dimension_semantics = [#tpu.dimension_semantics<parallel>], iteration_bounds = array<i64: 2>, scalar_prefetch = 0 : i64, scratch_operands = 0 : i64, tpu.core_type = #tpu.core_type<tc>, window_params = [{transform_indices = @transform_0, window_bounds = array<i64: 1, 8, 32>}, {transform_indices = @transform_1, window_bounds = array<i64: 1, 8, 32>}, {pipeline_mode = #tpu.pipeline_mode<synchronous>, transform_indices = @transform_2, window_bounds = array<i64: 3, 32, 32>}, {pipeline_mode = #tpu.pipeline_mode<synchronous>, transform_indices = @transform_3, window_bounds = array<i64: 3, 1, 32>}, {pipeline_mode = #tpu.pipeline_mode<synchronous>, transform_indices = @transform_4, window_bounds = array<i64: 3, 32, 32>}, {pipeline_mode = #tpu.pipeline_mode<synchronous>, transform_indices = @transform_5, window_bounds = array<i64: 3, 1, 32>}, {pipeline_mode = #tpu.pipeline_mode<synchronous>, transform_indices = @transform_6, window_bounds = array<i64: 3, 32, 32>}, {pipeline_mode = #tpu.pipeline_mode<synchronous>, transform_indices = @transform_7, window_bounds = array<i64: 3, 1, 32>}, {pipeline_mode = #tpu.pipeline_mode<synchronous>, transform_indices = @transform_8, window_bounds = array<i64: 3, 32, 32>}, {pipeline_mode = #tpu.pipeline_mode<synchronous>, transform_indices = @transform_9, window_bounds = array<i64: 3, 1, 32>}, {transform_indices = @transform_10, window_bounds = array<i64: 1, 8, 16>}, {transform_indices = @transform_11, window_bounds = array<i64: 1, 8, 32>}]} {
    %cst = arith.constant 3.200000e+01 : f32
    %0 = math.sqrt %cst : f32
    %cst_0 = arith.constant 1.000000e+00 : f32
    %1 = arith.divf %cst_0, %0 : f32
    %c0 = arith.constant 0 : index
    %c0_1 = arith.constant 0 : index
    %c0_2 = arith.constant 0 : index
    %2 = vector.load %arg2[%c0, %c0_1, %c0_2] : memref<1x8x32xf32, #tpu.memory_space<vmem>>, vector<1x8x32xf32>
    %3 = vector.shape_cast %2 : vector<1x8x32xf32> to vector<8x32xf32>
    %c0_3 = arith.constant 0 : index
    %c0_4 = arith.constant 0 : index
    %c0_5 = arith.constant 0 : index
    %4 = vector.load %arg1[%c0_3, %c0_4, %c0_5] : memref<1x8x32xf32, #tpu.memory_space<vmem>>, vector<1x8x32xf32>
    %5 = vector.shape_cast %4 : vector<1x8x32xf32> to vector<8x32xf32>
    %c0_6 = arith.constant 0 : index
    %c0_7 = arith.constant 0 : index
    %c0_8 = arith.constant 0 : index
    %6 = vector.load %arg3[%c0_6, %c0_7, %c0_8] : memref<3x32x32xf32, #tpu.memory_space<vmem>>, vector<1x32x32xf32>
    %7 = vector.shape_cast %6 : vector<1x32x32xf32> to vector<32x32xf32>
    %c0_9 = arith.constant 0 : index
    %c0_10 = arith.constant 0 : index
    %c0_11 = arith.constant 0 : index
    %8 = vector.load %arg4[%c0_9, %c0_10, %c0_11] : memref<3x1x32xf32, #tpu.memory_space<vmem>>, vector<1x1x32xf32>
    %9 = vector.shape_cast %8 : vector<1x1x32xf32> to vector<1x32xf32>
    %c0_12 = arith.constant 0 : index
    %c0_13 = arith.constant 0 : index
    %c0_14 = arith.constant 0 : index
    %10 = vector.load %arg5[%c0_12, %c0_13, %c0_14] : memref<3x32x32xf32, #tpu.memory_space<vmem>>, vector<1x32x32xf32>
    %11 = vector.shape_cast %10 : vector<1x32x32xf32> to vector<32x32xf32>
    %c0_15 = arith.constant 0 : index
    %c0_16 = arith.constant 0 : index
    %c0_17 = arith.constant 0 : index
    %12 = vector.load %arg6[%c0_15, %c0_16, %c0_17] : memref<3x1x32xf32, #tpu.memory_space<vmem>>, vector<1x1x32xf32>
    %13 = vector.shape_cast %12 : vector<1x1x32xf32> to vector<1x32xf32>
    %c0_18 = arith.constant 0 : index
    %c0_19 = arith.constant 0 : index
    %c0_20 = arith.constant 0 : index
    %14 = vector.load %arg7[%c0_18, %c0_19, %c0_20] : memref<3x32x32xf32, #tpu.memory_space<vmem>>, vector<1x32x32xf32>
    %15 = vector.shape_cast %14 : vector<1x32x32xf32> to vector<32x32xf32>
    %c0_21 = arith.constant 0 : index
    %c0_22 = arith.constant 0 : index
    %c0_23 = arith.constant 0 : index
    %16 = vector.load %arg8[%c0_21, %c0_22, %c0_23] : memref<3x1x32xf32, #tpu.memory_space<vmem>>, vector<1x1x32xf32>
    %17 = vector.shape_cast %16 : vector<1x1x32xf32> to vector<1x32xf32>
    %c0_24 = arith.constant 0 : index
    %c0_25 = arith.constant 0 : index
    %c0_26 = arith.constant 0 : index
    %18 = vector.load %arg9[%c0_24, %c0_25, %c0_26] : memref<3x32x32xf32, #tpu.memory_space<vmem>>, vector<1x32x32xf32>
    %19 = vector.shape_cast %18 : vector<1x32x32xf32> to vector<32x32xf32>
    %c0_27 = arith.constant 0 : index
    %c0_28 = arith.constant 0 : index
    %c0_29 = arith.constant 0 : index
    %20 = vector.load %arg10[%c0_27, %c0_28, %c0_29] : memref<3x1x32xf32, #tpu.memory_space<vmem>>, vector<1x1x32xf32>
    %21 = vector.shape_cast %20 : vector<1x1x32xf32> to vector<1x32xf32>
    %cst_30 = arith.constant dense<0.000000e+00> : vector<8x32xf32>
    %22 = tpu.matmul %5, %7, %cst_30 {dimension_numbers = #tpu.dot_dimension_numbers<[1], [0], [0], [1], [0, 0, 1, 1], [], []>} : vector<8x32xf32>, vector<32x32xf32>, vector<8x32xf32> -> vector<8x32xf32>
    %23 = vector.broadcast %9 : vector<1x32xf32> to vector<8x32xf32>
    %24 = arith.addf %22, %23 : vector<8x32xf32>
    %cst_31 = arith.constant 0.000000e+00 : f32
    %25 = vector.broadcast %cst_31 : f32 to vector<8x32xf32>
    %26 = arith.maximumf %24, %25 : vector<8x32xf32>
    %cst_32 = arith.constant dense<0.000000e+00> : vector<8x32xf32>
    %27 = tpu.matmul %26, %11, %cst_32 {dimension_numbers = #tpu.dot_dimension_numbers<[1], [0], [0], [1], [0, 0, 1, 1], [], []>} : vector<8x32xf32>, vector<32x32xf32>, vector<8x32xf32> -> vector<8x32xf32>
    %28 = vector.broadcast %13 : vector<1x32xf32> to vector<8x32xf32>
    %29 = arith.addf %27, %28 : vector<8x32xf32>
    %30 = tpu.concatenate %5, %3 in 0 : vector<8x32xf32>, vector<8x32xf32> -> vector<16x32xf32>
    %cst_33 = arith.constant dense<0.000000e+00> : vector<16x32xf32>
    %31 = tpu.matmul %30, %15, %cst_33 {dimension_numbers = #tpu.dot_dimension_numbers<[1], [0], [0], [1], [0, 0, 1, 1], [], []>} : vector<16x32xf32>, vector<32x32xf32>, vector<16x32xf32> -> vector<16x32xf32>
    %32 = vector.broadcast %17 : vector<1x32xf32> to vector<16x32xf32>
    %33 = arith.addf %31, %32 : vector<16x32xf32>
    %cst_34 = arith.constant 0.000000e+00 : f32
    %34 = vector.broadcast %cst_34 : f32 to vector<16x32xf32>
    %35 = arith.maximumf %33, %34 : vector<16x32xf32>
    %cst_35 = arith.constant dense<0.000000e+00> : vector<16x32xf32>
    %36 = tpu.matmul %35, %19, %cst_35 {dimension_numbers = #tpu.dot_dimension_numbers<[1], [0], [0], [1], [0, 0, 1, 1], [], []>} : vector<16x32xf32>, vector<32x32xf32>, vector<16x32xf32> -> vector<16x32xf32>
    %37 = vector.broadcast %21 : vector<1x32xf32> to vector<16x32xf32>
    %38 = arith.addf %36, %37 : vector<16x32xf32>
    %39 = vector.extract_strided_slice %38 {offsets = [0, 0], sizes = [8, 32], strides = [1, 1]} : vector<16x32xf32> to vector<8x32xf32>
    %40 = vector.extract_strided_slice %38 {offsets = [8, 0], sizes = [8, 32], strides = [1, 1]} : vector<16x32xf32> to vector<8x32xf32>
    %41 = vector.shape_cast %29 : vector<8x32xf32> to vector<1x8x32xf32>
    %42 = vector.shape_cast %39 : vector<8x32xf32> to vector<1x8x32xf32>
    %43 = vector.shape_cast %40 : vector<8x32xf32> to vector<1x8x32xf32>
    %44 = tpu.concatenate %43, %42 in 1 : vector<1x8x32xf32>, vector<1x8x32xf32> -> vector<1x16x32xf32>
    %45 = tpu.concatenate %43, %41 in 1 : vector<1x8x32xf32>, vector<1x8x32xf32> -> vector<1x16x32xf32>
    "tpu.trace_start"() <{level = 10 : i32, message = "bqd,bkd->bqk"}> : () -> ()
    %cst_36 = arith.constant dense<0.000000e+00> : vector<1x8x16xf32>
    %46 = tpu.matmul %41, %44, %cst_36 {dimension_numbers = #tpu.dot_dimension_numbers<[2], [2], [1], [1], [0, 0, 0, 1, 1, 1], [0], [0]>} : vector<1x8x32xf32>, vector<1x16x32xf32>, vector<1x8x16xf32> -> vector<1x8x16xf32>
    "tpu.trace_stop"() : () -> ()
    %47 = vector.broadcast %1 : f32 to vector<1x8x16xf32>
    %48 = arith.mulf %46, %47 : vector<1x8x16xf32>
    %cst_37 = arith.constant dense<0xFF800000> : vector<1x16xf32>
    %49 = vector.multi_reduction <maximumf>, %48, %cst_37 [1] : vector<1x8x16xf32> to vector<1x16xf32>
    %50 = vector.shape_cast %49 : vector<1x16xf32> to vector<1x1x16xf32>
    %51 = vector.broadcast %50 : vector<1x1x16xf32> to vector<1x8x16xf32>
    %52 = arith.subf %48, %51 : vector<1x8x16xf32>
    %53 = math.exp %52 : vector<1x8x16xf32>
    %cst_38 = arith.constant dense<0.000000e+00> : vector<1x16xf32>
    %54 = vector.multi_reduction <add>, %53, %cst_38 [1] : vector<1x8x16xf32> to vector<1x16xf32>
    %55 = vector.shape_cast %54 : vector<1x16xf32> to vector<1x1x16xf32>
    %56 = tpu.reciprocal %55 : vector<1x1x16xf32> -> vector<1x1x16xf32>
    %57 = vector.broadcast %56 : vector<1x1x16xf32> to vector<1x8x16xf32>
    %58 = arith.mulf %53, %57 : vector<1x8x16xf32>
    "tpu.trace_start"() <{level = 10 : i32, message = "bqk,bkd->bqd"}> : () -> ()
    %cst_39 = arith.constant dense<0.000000e+00> : vector<1x8x32xf32>
    %59 = tpu.matmul %58, %45, %cst_39 {dimension_numbers = #tpu.dot_dimension_numbers<[2], [1], [1], [2], [0, 0, 0, 1, 1, 2], [0], [0]>} : vector<1x8x16xf32>, vector<1x16x32xf32>, vector<1x8x32xf32> -> vector<1x8x32xf32>
    "tpu.trace_stop"() : () -> ()
    %60 = vector.shape_cast %59 : vector<1x8x32xf32> to vector<8x32xf32>
    %c1 = arith.constant 1 : index
    %c0_40 = arith.constant 0 : index
    %c0_41 = arith.constant 0 : index
    %61 = vector.load %arg3[%c1, %c0_40, %c0_41] : memref<3x32x32xf32, #tpu.memory_space<vmem>>, vector<1x32x32xf32>
    %62 = vector.shape_cast %61 : vector<1x32x32xf32> to vector<32x32xf32>
    %c1_42 = arith.constant 1 : index
    %c0_43 = arith.constant 0 : index
    %c0_44 = arith.constant 0 : index
    %63 = vector.load %arg4[%c1_42, %c0_43, %c0_44] : memref<3x1x32xf32, #tpu.memory_space<vmem>>, vector<1x1x32xf32>
    %64 = vector.shape_cast %63 : vector<1x1x32xf32> to vector<1x32xf32>
    %c1_45 = arith.constant 1 : index
    %c0_46 = arith.constant 0 : index
    %c0_47 = arith.constant 0 : index
    %65 = vector.load %arg5[%c1_45, %c0_46, %c0_47] : memref<3x32x32xf32, #tpu.memory_space<vmem>>, vector<1x32x32xf32>
    %66 = vector.shape_cast %65 : vector<1x32x32xf32> to vector<32x32xf32>
    %c1_48 = arith.constant 1 : index
    %c0_49 = arith.constant 0 : index
    %c0_50 = arith.constant 0 : index
    %67 = vector.load %arg6[%c1_48, %c0_49, %c0_50] : memref<3x1x32xf32, #tpu.memory_space<vmem>>, vector<1x1x32xf32>
    %68 = vector.shape_cast %67 : vector<1x1x32xf32> to vector<1x32xf32>
    %c1_51 = arith.constant 1 : index
    %c0_52 = arith.constant 0 : index
    %c0_53 = arith.constant 0 : index
    %69 = vector.load %arg7[%c1_51, %c0_52, %c0_53] : memref<3x32x32xf32, #tpu.memory_space<vmem>>, vector<1x32x32xf32>
    %70 = vector.shape_cast %69 : vector<1x32x32xf32> to vector<32x32xf32>
    %c1_54 = arith.constant 1 : index
    %c0_55 = arith.constant 0 : index
    %c0_56 = arith.constant 0 : index
    %71 = vector.load %arg8[%c1_54, %c0_55, %c0_56] : memref<3x1x32xf32, #tpu.memory_space<vmem>>, vector<1x1x32xf32>
    %72 = vector.shape_cast %71 : vector<1x1x32xf32> to vector<1x32xf32>
    %c1_57 = arith.constant 1 : index
    %c0_58 = arith.constant 0 : index
    %c0_59 = arith.constant 0 : index
    %73 = vector.load %arg9[%c1_57, %c0_58, %c0_59] : memref<3x32x32xf32, #tpu.memory_space<vmem>>, vector<1x32x32xf32>
    %74 = vector.shape_cast %73 : vector<1x32x32xf32> to vector<32x32xf32>
    %c1_60 = arith.constant 1 : index
    %c0_61 = arith.constant 0 : index
    %c0_62 = arith.constant 0 : index
    %75 = vector.load %arg10[%c1_60, %c0_61, %c0_62] : memref<3x1x32xf32, #tpu.memory_space<vmem>>, vector<1x1x32xf32>
    %76 = vector.shape_cast %75 : vector<1x1x32xf32> to vector<1x32xf32>
    %cst_63 = arith.constant dense<0.000000e+00> : vector<8x32xf32>
    %77 = tpu.matmul %60, %62, %cst_63 {dimension_numbers = #tpu.dot_dimension_numbers<[1], [0], [0], [1], [0, 0, 1, 1], [], []>} : vector<8x32xf32>, vector<32x32xf32>, vector<8x32xf32> -> vector<8x32xf32>
    %78 = vector.broadcast %64 : vector<1x32xf32> to vector<8x32xf32>
    %79 = arith.addf %77, %78 : vector<8x32xf32>
    %cst_64 = arith.constant 0.000000e+00 : f32
    %80 = vector.broadcast %cst_64 : f32 to vector<8x32xf32>
    %81 = arith.maximumf %79, %80 : vector<8x32xf32>
    %cst_65 = arith.constant dense<0.000000e+00> : vector<8x32xf32>
    %82 = tpu.matmul %81, %66, %cst_65 {dimension_numbers = #tpu.dot_dimension_numbers<[1], [0], [0], [1], [0, 0, 1, 1], [], []>} : vector<8x32xf32>, vector<32x32xf32>, vector<8x32xf32> -> vector<8x32xf32>
    %83 = vector.broadcast %68 : vector<1x32xf32> to vector<8x32xf32>
    %84 = arith.addf %82, %83 : vector<8x32xf32>
    %85 = tpu.concatenate %60, %3 in 0 : vector<8x32xf32>, vector<8x32xf32> -> vector<16x32xf32>
    %cst_66 = arith.constant dense<0.000000e+00> : vector<16x32xf32>
    %86 = tpu.matmul %85, %70, %cst_66 {dimension_numbers = #tpu.dot_dimension_numbers<[1], [0], [0], [1], [0, 0, 1, 1], [], []>} : vector<16x32xf32>, vector<32x32xf32>, vector<16x32xf32> -> vector<16x32xf32>
    %87 = vector.broadcast %72 : vector<1x32xf32> to vector<16x32xf32>
    %88 = arith.addf %86, %87 : vector<16x32xf32>
    %cst_67 = arith.constant 0.000000e+00 : f32
    %89 = vector.broadcast %cst_67 : f32 to vector<16x32xf32>
    %90 = arith.maximumf %88, %89 : vector<16x32xf32>
    %cst_68 = arith.constant dense<0.000000e+00> : vector<16x32xf32>
    %91 = tpu.matmul %90, %74, %cst_68 {dimension_numbers = #tpu.dot_dimension_numbers<[1], [0], [0], [1], [0, 0, 1, 1], [], []>} : vector<16x32xf32>, vector<32x32xf32>, vector<16x32xf32> -> vector<16x32xf32>
    %92 = vector.broadcast %76 : vector<1x32xf32> to vector<16x32xf32>
    %93 = arith.addf %91, %92 : vector<16x32xf32>
    %94 = vector.extract_strided_slice %93 {offsets = [0, 0], sizes = [8, 32], strides = [1, 1]} : vector<16x32xf32> to vector<8x32xf32>
    %95 = vector.extract_strided_slice %93 {offsets = [8, 0], sizes = [8, 32], strides = [1, 1]} : vector<16x32xf32> to vector<8x32xf32>
    %96 = vector.shape_cast %84 : vector<8x32xf32> to vector<1x8x32xf32>
    %97 = vector.shape_cast %94 : vector<8x32xf32> to vector<1x8x32xf32>
    %98 = vector.shape_cast %95 : vector<8x32xf32> to vector<1x8x32xf32>
    %99 = tpu.concatenate %98, %97 in 1 : vector<1x8x32xf32>, vector<1x8x32xf32> -> vector<1x16x32xf32>
    %100 = tpu.concatenate %98, %96 in 1 : vector<1x8x32xf32>, vector<1x8x32xf32> -> vector<1x16x32xf32>
    "tpu.trace_start"() <{level = 10 : i32, message = "bqd,bkd->bqk"}> : () -> ()
    %cst_69 = arith.constant dense<0.000000e+00> : vector<1x8x16xf32>
    %101 = tpu.matmul %96, %99, %cst_69 {dimension_numbers = #tpu.dot_dimension_numbers<[2], [2], [1], [1], [0, 0, 0, 1, 1, 1], [0], [0]>} : vector<1x8x32xf32>, vector<1x16x32xf32>, vector<1x8x16xf32> -> vector<1x8x16xf32>
    "tpu.trace_stop"() : () -> ()
    %102 = vector.broadcast %1 : f32 to vector<1x8x16xf32>
    %103 = arith.mulf %101, %102 : vector<1x8x16xf32>
    %cst_70 = arith.constant dense<0xFF800000> : vector<1x16xf32>
    %104 = vector.multi_reduction <maximumf>, %103, %cst_70 [1] : vector<1x8x16xf32> to vector<1x16xf32>
    %105 = vector.shape_cast %104 : vector<1x16xf32> to vector<1x1x16xf32>
    %106 = vector.broadcast %105 : vector<1x1x16xf32> to vector<1x8x16xf32>
    %107 = arith.subf %103, %106 : vector<1x8x16xf32>
    %108 = math.exp %107 : vector<1x8x16xf32>
    %cst_71 = arith.constant dense<0.000000e+00> : vector<1x16xf32>
    %109 = vector.multi_reduction <add>, %108, %cst_71 [1] : vector<1x8x16xf32> to vector<1x16xf32>
    %110 = vector.shape_cast %109 : vector<1x16xf32> to vector<1x1x16xf32>
    %111 = tpu.reciprocal %110 : vector<1x1x16xf32> -> vector<1x1x16xf32>
    %112 = vector.broadcast %111 : vector<1x1x16xf32> to vector<1x8x16xf32>
    %113 = arith.mulf %108, %112 : vector<1x8x16xf32>
    "tpu.trace_start"() <{level = 10 : i32, message = "bqk,bkd->bqd"}> : () -> ()
    %cst_72 = arith.constant dense<0.000000e+00> : vector<1x8x32xf32>
    %114 = tpu.matmul %113, %100, %cst_72 {dimension_numbers = #tpu.dot_dimension_numbers<[2], [1], [1], [2], [0, 0, 0, 1, 1, 2], [0], [0]>} : vector<1x8x16xf32>, vector<1x16x32xf32>, vector<1x8x32xf32> -> vector<1x8x32xf32>
    "tpu.trace_stop"() : () -> ()
    %115 = vector.shape_cast %114 : vector<1x8x32xf32> to vector<8x32xf32>
    %c2 = arith.constant 2 : index
    %c0_73 = arith.constant 0 : index
    %c0_74 = arith.constant 0 : index
    %116 = vector.load %arg3[%c2, %c0_73, %c0_74] : memref<3x32x32xf32, #tpu.memory_space<vmem>>, vector<1x32x32xf32>
    %117 = vector.shape_cast %116 : vector<1x32x32xf32> to vector<32x32xf32>
    %c2_75 = arith.constant 2 : index
    %c0_76 = arith.constant 0 : index
    %c0_77 = arith.constant 0 : index
    %118 = vector.load %arg4[%c2_75, %c0_76, %c0_77] : memref<3x1x32xf32, #tpu.memory_space<vmem>>, vector<1x1x32xf32>
    %119 = vector.shape_cast %118 : vector<1x1x32xf32> to vector<1x32xf32>
    %c2_78 = arith.constant 2 : index
    %c0_79 = arith.constant 0 : index
    %c0_80 = arith.constant 0 : index
    %120 = vector.load %arg5[%c2_78, %c0_79, %c0_80] : memref<3x32x32xf32, #tpu.memory_space<vmem>>, vector<1x32x32xf32>
    %121 = vector.shape_cast %120 : vector<1x32x32xf32> to vector<32x32xf32>
    %c2_81 = arith.constant 2 : index
    %c0_82 = arith.constant 0 : index
    %c0_83 = arith.constant 0 : index
    %122 = vector.load %arg6[%c2_81, %c0_82, %c0_83] : memref<3x1x32xf32, #tpu.memory_space<vmem>>, vector<1x1x32xf32>
    %123 = vector.shape_cast %122 : vector<1x1x32xf32> to vector<1x32xf32>
    %c2_84 = arith.constant 2 : index
    %c0_85 = arith.constant 0 : index
    %c0_86 = arith.constant 0 : index
    %124 = vector.load %arg7[%c2_84, %c0_85, %c0_86] : memref<3x32x32xf32, #tpu.memory_space<vmem>>, vector<1x32x32xf32>
    %125 = vector.shape_cast %124 : vector<1x32x32xf32> to vector<32x32xf32>
    %c2_87 = arith.constant 2 : index
    %c0_88 = arith.constant 0 : index
    %c0_89 = arith.constant 0 : index
    %126 = vector.load %arg8[%c2_87, %c0_88, %c0_89] : memref<3x1x32xf32, #tpu.memory_space<vmem>>, vector<1x1x32xf32>
    %127 = vector.shape_cast %126 : vector<1x1x32xf32> to vector<1x32xf32>
    %c2_90 = arith.constant 2 : index
    %c0_91 = arith.constant 0 : index
    %c0_92 = arith.constant 0 : index
    %128 = vector.load %arg9[%c2_90, %c0_91, %c0_92] : memref<3x32x32xf32, #tpu.memory_space<vmem>>, vector<1x32x32xf32>
    %129 = vector.shape_cast %128 : vector<1x32x32xf32> to vector<32x32xf32>
    %c2_93 = arith.constant 2 : index
    %c0_94 = arith.constant 0 : index
    %c0_95 = arith.constant 0 : index
    %130 = vector.load %arg10[%c2_93, %c0_94, %c0_95] : memref<3x1x32xf32, #tpu.memory_space<vmem>>, vector<1x1x32xf32>
    %131 = vector.shape_cast %130 : vector<1x1x32xf32> to vector<1x32xf32>
    %cst_96 = arith.constant dense<0.000000e+00> : vector<8x32xf32>
    %132 = tpu.matmul %115, %117, %cst_96 {dimension_numbers = #tpu.dot_dimension_numbers<[1], [0], [0], [1], [0, 0, 1, 1], [], []>} : vector<8x32xf32>, vector<32x32xf32>, vector<8x32xf32> -> vector<8x32xf32>
    %133 = vector.broadcast %119 : vector<1x32xf32> to vector<8x32xf32>
    %134 = arith.addf %132, %133 : vector<8x32xf32>
    %cst_97 = arith.constant 0.000000e+00 : f32
    %135 = vector.broadcast %cst_97 : f32 to vector<8x32xf32>
    %136 = arith.maximumf %134, %135 : vector<8x32xf32>
    %cst_98 = arith.constant dense<0.000000e+00> : vector<8x32xf32>
    %137 = tpu.matmul %136, %121, %cst_98 {dimension_numbers = #tpu.dot_dimension_numbers<[1], [0], [0], [1], [0, 0, 1, 1], [], []>} : vector<8x32xf32>, vector<32x32xf32>, vector<8x32xf32> -> vector<8x32xf32>
    %138 = vector.broadcast %123 : vector<1x32xf32> to vector<8x32xf32>
    %139 = arith.addf %137, %138 : vector<8x32xf32>
    %140 = tpu.concatenate %115, %3 in 0 : vector<8x32xf32>, vector<8x32xf32> -> vector<16x32xf32>
    %cst_99 = arith.constant dense<0.000000e+00> : vector<16x32xf32>
    %141 = tpu.matmul %140, %125, %cst_99 {dimension_numbers = #tpu.dot_dimension_numbers<[1], [0], [0], [1], [0, 0, 1, 1], [], []>} : vector<16x32xf32>, vector<32x32xf32>, vector<16x32xf32> -> vector<16x32xf32>
    %142 = vector.broadcast %127 : vector<1x32xf32> to vector<16x32xf32>
    %143 = arith.addf %141, %142 : vector<16x32xf32>
    %cst_100 = arith.constant 0.000000e+00 : f32
    %144 = vector.broadcast %cst_100 : f32 to vector<16x32xf32>
    %145 = arith.maximumf %143, %144 : vector<16x32xf32>
    %cst_101 = arith.constant dense<0.000000e+00> : vector<16x32xf32>
    %146 = tpu.matmul %145, %129, %cst_101 {dimension_numbers = #tpu.dot_dimension_numbers<[1], [0], [0], [1], [0, 0, 1, 1], [], []>} : vector<16x32xf32>, vector<32x32xf32>, vector<16x32xf32> -> vector<16x32xf32>
    %147 = vector.broadcast %131 : vector<1x32xf32> to vector<16x32xf32>
    %148 = arith.addf %146, %147 : vector<16x32xf32>
    %149 = vector.extract_strided_slice %148 {offsets = [0, 0], sizes = [8, 32], strides = [1, 1]} : vector<16x32xf32> to vector<8x32xf32>
    %150 = vector.extract_strided_slice %148 {offsets = [8, 0], sizes = [8, 32], strides = [1, 1]} : vector<16x32xf32> to vector<8x32xf32>
    %151 = vector.shape_cast %139 : vector<8x32xf32> to vector<1x8x32xf32>
    %152 = vector.shape_cast %149 : vector<8x32xf32> to vector<1x8x32xf32>
    %153 = vector.shape_cast %150 : vector<8x32xf32> to vector<1x8x32xf32>
    %154 = tpu.concatenate %153, %152 in 1 : vector<1x8x32xf32>, vector<1x8x32xf32> -> vector<1x16x32xf32>
    %155 = tpu.concatenate %153, %151 in 1 : vector<1x8x32xf32>, vector<1x8x32xf32> -> vector<1x16x32xf32>
    "tpu.trace_start"() <{level = 10 : i32, message = "bqd,bkd->bqk"}> : () -> ()
    %cst_102 = arith.constant dense<0.000000e+00> : vector<1x8x16xf32>
    %156 = tpu.matmul %151, %154, %cst_102 {dimension_numbers = #tpu.dot_dimension_numbers<[2], [2], [1], [1], [0, 0, 0, 1, 1, 1], [0], [0]>} : vector<1x8x32xf32>, vector<1x16x32xf32>, vector<1x8x16xf32> -> vector<1x8x16xf32>
    "tpu.trace_stop"() : () -> ()
    %157 = vector.broadcast %1 : f32 to vector<1x8x16xf32>
    %158 = arith.mulf %156, %157 : vector<1x8x16xf32>
    %cst_103 = arith.constant dense<0xFF800000> : vector<1x16xf32>
    %159 = vector.multi_reduction <maximumf>, %158, %cst_103 [1] : vector<1x8x16xf32> to vector<1x16xf32>
    %160 = vector.shape_cast %159 : vector<1x16xf32> to vector<1x1x16xf32>
    %161 = vector.broadcast %160 : vector<1x1x16xf32> to vector<1x8x16xf32>
    %162 = arith.subf %158, %161 : vector<1x8x16xf32>
    %163 = math.exp %162 : vector<1x8x16xf32>
    %cst_104 = arith.constant dense<0.000000e+00> : vector<1x16xf32>
    %164 = vector.multi_reduction <add>, %163, %cst_104 [1] : vector<1x8x16xf32> to vector<1x16xf32>
    %165 = vector.shape_cast %164 : vector<1x16xf32> to vector<1x1x16xf32>
    %166 = tpu.reciprocal %165 : vector<1x1x16xf32> -> vector<1x1x16xf32>
    %167 = vector.broadcast %166 : vector<1x1x16xf32> to vector<1x8x16xf32>
    %168 = arith.mulf %163, %167 : vector<1x8x16xf32>
    "tpu.trace_start"() <{level = 10 : i32, message = "bqk,bkd->bqd"}> : () -> ()
    %cst_105 = arith.constant dense<0.000000e+00> : vector<1x8x32xf32>
    %169 = tpu.matmul %168, %155, %cst_105 {dimension_numbers = #tpu.dot_dimension_numbers<[2], [1], [1], [2], [0, 0, 0, 1, 1, 2], [0], [0]>} : vector<1x8x16xf32>, vector<1x16x32xf32>, vector<1x8x32xf32> -> vector<1x8x32xf32>
    "tpu.trace_stop"() : () -> ()
    %c0_106 = arith.constant 0 : index
    %c0_107 = arith.constant 0 : index
    %c0_108 = arith.constant 0 : index
    %170 = vector.load %arg11[%c0_106, %c0_107, %c0_108] : memref<1x8x16xf32, #tpu.memory_space<vmem>>, vector<1x8x16xf32>
    tpu.vector_store %arg11[%c0_106, %c0_107, %c0_108], %158 {strides = array<i32>} : memref<1x8x16xf32, #tpu.memory_space<vmem>>, vector<1x8x16xf32>,
    %c0_109 = arith.constant 0 : index
    %c0_110 = arith.constant 0 : index
    %c0_111 = arith.constant 0 : index
    %171 = vector.load %arg12[%c0_109, %c0_110, %c0_111] : memref<1x8x32xf32, #tpu.memory_space<vmem>>, vector<1x8x32xf32>
    tpu.vector_store %arg12[%c0_109, %c0_110, %c0_111], %169 {strides = array<i32>} : memref<1x8x32xf32, #tpu.memory_space<vmem>>, vector<1x8x32xf32>,
    return
  }
  func.func @transform_0(%arg0: i32) -> (i32, i32, i32) {
    %c0_i32 = arith.constant 0 : i32
    %c0_i32_0 = arith.constant 0 : i32
    %c0_i32_1 = arith.constant 0 : i32
    return %arg0, %c0_i32, %c0_i32_0 : i32, i32, i32
  }
  func.func @transform_1(%arg0: i32) -> (i32, i32, i32) {
    %c0_i32 = arith.constant 0 : i32
    %c0_i32_0 = arith.constant 0 : i32
    %c0_i32_1 = arith.constant 0 : i32
    return %arg0, %c0_i32, %c0_i32_0 : i32, i32, i32
  }
  func.func @transform_2(%arg0: i32) -> (i32, i32, i32) {
    %c0_i32 = arith.constant 0 : i32
    %c0_i32_0 = arith.constant 0 : i32
    %c0_i32_1 = arith.constant 0 : i32
    %c0_i32_2 = arith.constant 0 : i32
    return %c0_i32, %c0_i32_0, %c0_i32_1 : i32, i32, i32
  }
  func.func @transform_3(%arg0: i32) -> (i32, i32, i32) {
    %c0_i32 = arith.constant 0 : i32
    %c0_i32_0 = arith.constant 0 : i32
    %c0_i32_1 = arith.constant 0 : i32
    %c0_i32_2 = arith.constant 0 : i32
    return %c0_i32, %c0_i32_0, %c0_i32_1 : i32, i32, i32
  }
  func.func @transform_4(%arg0: i32) -> (i32, i32, i32) {
    %c0_i32 = arith.constant 0 : i32
    %c0_i32_0 = arith.constant 0 : i32
    %c0_i32_1 = arith.constant 0 : i32
    %c0_i32_2 = arith.constant 0 : i32
    return %c0_i32, %c0_i32_0, %c0_i32_1 : i32, i32, i32
  }
  func.func @transform_5(%arg0: i32) -> (i32, i32, i32) {
    %c0_i32 = arith.constant 0 : i32
    %c0_i32_0 = arith.constant 0 : i32
    %c0_i32_1 = arith.constant 0 : i32
    %c0_i32_2 = arith.constant 0 : i32
    return %c0_i32, %c0_i32_0, %c0_i32_1 : i32, i32, i32
  }
  func.func @transform_6(%arg0: i32) -> (i32, i32, i32) {
    %c0_i32 = arith.constant 0 : i32
    %c0_i32_0 = arith.constant 0 : i32
    %c0_i32_1 = arith.constant 0 : i32
    %c0_i32_2 = arith.constant 0 : i32
    return %c0_i32, %c0_i32_0, %c0_i32_1 : i32, i32, i32
  }
  func.func @transform_7(%arg0: i32) -> (i32, i32, i32) {
    %c0_i32 = arith.constant 0 : i32
    %c0_i32_0 = arith.constant 0 : i32
    %c0_i32_1 = arith.constant 0 : i32
    %c0_i32_2 = arith.constant 0 : i32
    return %c0_i32, %c0_i32_0, %c0_i32_1 : i32, i32, i32
  }
  func.func @transform_8(%arg0: i32) -> (i32, i32, i32) {
    %c0_i32 = arith.constant 0 : i32
    %c0_i32_0 = arith.constant 0 : i32
    %c0_i32_1 = arith.constant 0 : i32
    %c0_i32_2 = arith.constant 0 : i32
    return %c0_i32, %c0_i32_0, %c0_i32_1 : i32, i32, i32
  }
  func.func @transform_9(%arg0: i32) -> (i32, i32, i32) {
    %c0_i32 = arith.constant 0 : i32
    %c0_i32_0 = arith.constant 0 : i32
    %c0_i32_1 = arith.constant 0 : i32
    %c0_i32_2 = arith.constant 0 : i32
    return %c0_i32, %c0_i32_0, %c0_i32_1 : i32, i32, i32
  }
  func.func @transform_10(%arg0: i32) -> (i32, i32, i32) {
    %c0_i32 = arith.constant 0 : i32
    %c0_i32_0 = arith.constant 0 : i32
    %c0_i32_1 = arith.constant 0 : i32
    return %arg0, %c0_i32, %c0_i32_0 : i32, i32, i32
  }
  func.func @transform_11(%arg0: i32) -> (i32, i32, i32) {
    %c0_i32 = arith.constant 0 : i32
    %c0_i32_0 = arith.constant 0 : i32
    %c0_i32_1 = arith.constant 0 : i32
    return %arg0, %c0_i32, %c0_i32_0 : i32, i32, i32
  }
}

</mosaic_0001>

<llo_original>
// kernel: _interaction_encoder.1
$region0: #{_interaction_encoder.1}
  #allocation0 [shape = 'u32[]', space=smem, size = 0x4, offset = 0x4, fixed_abs, tag = 'smem constant byte address 0x4 - core index']
  #allocation1 [shape = 'u32[144,128]{1,0:T(1,128)}', space=vmem, size = 0x12000, scoped, tag = 'internal scratch']
  %s0 = inlined_call_operand.hbm [shape: f32[2,8,32], index: 0, kind: input, shape index: {}]
  %s1 = inlined_call_operand.hbm [shape: f32[2,8,32], index: 1, kind: input, shape index: {}]
  %s2 = inlined_call_operand.hbm [shape: f32[3,32,32], index: 2, kind: input, shape index: {}]
  %s3 = inlined_call_operand.vmem [shape: f32[3,1,32], index: 3, kind: input, shape index: {}]
  %s4 = inlined_call_operand.hbm [shape: f32[3,32,32], index: 4, kind: input, shape index: {}]
  %s5 = inlined_call_operand.vmem [shape: f32[3,1,32], index: 5, kind: input, shape index: {}]
  %s6 = inlined_call_operand.hbm [shape: f32[3,32,32], index: 6, kind: input, shape index: {}]
  %s7 = inlined_call_operand.vmem [shape: f32[3,1,32], index: 7, kind: input, shape index: {}]
  %s8 = inlined_call_operand.hbm [shape: f32[3,32,32], index: 8, kind: input, shape index: {}]
  %s9 = inlined_call_operand.vmem [shape: f32[3,1,32], index: 9, kind: input, shape index: {}]
  %s10 = inlined_call_operand.hbm [shape: f32[2,8,16], index: 10, kind: output, shape index: {0}]
  %s11 = inlined_call_operand.hbm [shape: f32[2,8,32], index: 11, kind: output, shape index: {1}]
  %12 = xla_tuple %s10, %s11
  %s13 = sld [smem:[#allocation0]]
  $region105: #{_interaction_encoder.1} parent=0
    _
  %s15 = ssub.s32 1, %s13
  %s16 = scalar_select 0, %s15, %s13
  $region1: #{_interaction_encoder.1} parent=0
    #allocation2 [shape = 'u8[8192]{0}', space=vmem, size = 0x2000, scoped, tag = 'input window, operand 0']
    #allocation3 [shape = 's32[2]{0}', space=sflag, size = 0x8, scoped, tag = 'scoped memory for _interaction_encoder.1']
    #allocation4 [shape = 's32[2]{0}', space=sflag, size = 0x8, scoped, tag = 'scoped memory for _interaction_encoder.1']
    #allocation5 [shape = 'u8[8192]{0}', space=vmem, size = 0x2000, scoped, tag = 'input window, operand 1']
    #allocation6 [shape = 's32[2]{0}', space=sflag, size = 0x8, scoped, tag = 'scoped memory for _interaction_encoder.1']
    #allocation7 [shape = 'u8[49152]{0}', space=vmem, size = 0xc000, scoped, tag = 'input window, operand 2, single buffered']
    #allocation8 [shape = 'u8[49152]{0}', space=vmem, size = 0xc000, scoped, tag = 'input window, operand 4, single buffered']
    #allocation9 [shape = 's32[1]{0}', space=sflag, size = 0x4, scoped, tag = 'scoped memory for _interaction_encoder.1']
    #allocation10 [shape = 'u8[49152]{0}', space=vmem, size = 0xc000, scoped, tag = 'input window, operand 6, single buffered']
    #allocation11 [shape = 'u8[49152]{0}', space=vmem, size = 0xc000, scoped, tag = 'input window, operand 8, single buffered']
    #allocation12 [shape = 's32[1]{0}', space=sflag, size = 0x4, scoped, tag = 'scoped memory for _interaction_encoder.1']
    #allocation13 [shape = 'u8[8192]{0}', space=vmem, size = 0x2000, scoped, tag = 'output window, operand 0']
    #allocation14 [shape = 'u8[8192]{0}', space=vmem, size = 0x2000, scoped, tag = 'output window, operand 1']
    #allocation15 [shape = 's32[2]{0}', space=sflag, size = 0x8, scoped, tag = 'scoped memory for _interaction_encoder.1']
    %17 = vsyncpa [#allocation3], 0
    %s18 = scalar_lea.sflag [#allocation3], 1
    %19 = vsyncpa %s18, 0
    %20 = vsyncpa [#allocation6], 0
    %s21 = scalar_lea.sflag [#allocation6], 1
    %22 = vsyncpa %s21, 0
    %23 = vsyncpa [#allocation9], 0
    %24 = vsyncpa [#allocation12], 0
    %25 = vsyncpa [#allocation4], 0
    %s26 = scalar_lea.sflag [#allocation4], 1
    %27 = vsyncpa %s26, 0
    %28 = vsyncpa [#allocation15], 0
    %s29 = scalar_lea.sflag [#allocation15], 1
    %30 = vsyncpa %s29, 0
    loop: start=0, step=1, limit=4
    $region2: #{_interaction_encoder.1} parent=1 // loop_pre_header
      _
    $region3: #{_interaction_encoder.1} parent=1 // loop_header
      %s32 = sphi 0, %s36
      %p33 = scmp.ge.s32.totalorder %s32, 4
      %s42 = sphi 0, %s44
      %s45 = sphi 0, %s42
      %s46 = sphi 0, %s45
      %s62 = sphi 0, %s46
      %s68 = sphi 0, %s70
      %s71 = sphi 0, %s68
      %s72 = sphi 0, %s71
      %s88 = sphi 0, %s72
      %s92 = sphi 0, %s92
      %s94 = sphi 0, %s92
      %s95 = sphi 0, %s94
      %s109 = sphi 0, %s95
      %s113 = sphi 0, %s113
      %s115 = sphi 0, %s113
      %s116 = sphi 0, %s115
      %s130 = sphi 0, %s116
      %s134 = sphi 0, %s134
      %s136 = sphi 0, %s134
      %s137 = sphi 0, %s136
      %s151 = sphi 0, %s137
      %s155 = sphi 0, %s155
      %s157 = sphi 0, %s155
      %s158 = sphi 0, %s157
      %s172 = sphi 0, %s158
      %s176 = sphi 0, %s176
      %s178 = sphi 0, %s176
      %s179 = sphi 0, %s178
      %s193 = sphi 0, %s179
      %s197 = sphi 0, %s197
      %s199 = sphi 0, %s197
      %s200 = sphi 0, %s199
      %s214 = sphi 0, %s200
      %s218 = sphi 0, %s218
      %s220 = sphi 0, %s218
      %s221 = sphi 0, %s220
      %s235 = sphi 0, %s221
      %s239 = sphi 0, %s239
      %s241 = sphi 0, %s239
      %s242 = sphi 0, %s241
      %s256 = sphi 0, %s242
      %s262 = sphi 0, %s264
      %s265 = sphi 0, %s262
      %s266 = sphi 0, %s265
      %s282 = sphi 0, %s266
      %s288 = sphi 0, %s290
      %s291 = sphi 0, %s288
      %s292 = sphi 0, %s291
      %s308 = sphi 0, %s292
    $region4: #{_interaction_encoder.1} parent=1 // loop_header_branch
      %35 = sbr.rel (%p33) target = $region8
    $region5: #{_interaction_encoder.1} parent=1 // loop_body
      %s37 = ssub.s32 %s32, 1
      %s38 = ssub.s32 %s32, 2
      %s39 = sadd.s32 %s32, 1
      %s40 = ssub.s32 %s32, %s39
      %p41 = scmp.eq.s32.totalorder %s40, 0
      %s43 = sadd.s32 %s42, 1
      %s44 = scalar_select %p41, %s42, %s43
      %p47 = pneg %p41
      %p48 = scmp.eq.s32.totalorder %s32, 1
      %p49 = por %p47, %p48
      %p50 = scmp.ne.s32.totalorder %s42, %s45
      %p51 = scmp.eq.s32.totalorder %s32, 0
      %p52 = por %p50, %p51
      %p53 = scmp.ne.s32.totalorder %s42, %s45
      %p54 = scmp.eq.s32.totalorder %s37, 1
      %p55 = por %p53, %p54
      %p56 = scmp.ne.s32.totalorder %s45, %s46
      %p57 = scmp.eq.s32.totalorder %s37, 0
      %p58 = por %p56, %p57
      %p59 = scmp.ne.s32.totalorder %s45, %s46
      %p60 = scmp.eq.s32.totalorder %s38, 1
      %p61 = por %p59, %p60
      %p63 = scmp.ne.s32.totalorder %s46, %s62
      %p64 = scmp.eq.s32.totalorder %s38, 0
      %p65 = por %p63, %p64
      %s66 = ssub.s32 %s32, %s39
      %p67 = scmp.eq.s32.totalorder %s66, 0
      %s69 = sadd.s32 %s68, 1
      %s70 = scalar_select %p67, %s68, %s69
      %p73 = pneg %p67
      %p74 = scmp.eq.s32.totalorder %s32, 1
      %p75 = por %p73, %p74
      %p76 = scmp.ne.s32.totalorder %s68, %s71
      %p77 = scmp.eq.s32.totalorder %s32, 0
      %p78 = por %p76, %p77
      %p79 = scmp.ne.s32.totalorder %s68, %s71
      %p80 = scmp.eq.s32.totalorder %s37, 1
      %p81 = por %p79, %p80
      %p82 = scmp.ne.s32.totalorder %s71, %s72
      %p83 = scmp.eq.s32.totalorder %s37, 0
      %p84 = por %p82, %p83
      %p85 = scmp.ne.s32.totalorder %s71, %s72
      %p86 = scmp.eq.s32.totalorder %s38, 1
      %p87 = por %p85, %p86
      %p89 = scmp.ne.s32.totalorder %s72, %s88
      %p90 = scmp.eq.s32.totalorder %s38, 0
      %p91 = por %p89, %p90
      %s93 = sadd.s32 %s92, 1
      %p96 = scmp.eq.s32.totalorder %s32, 1
      %p97 = scmp.ne.s32.totalorder %s92, %s94
      %p98 = scmp.eq.s32.totalorder %s32, 0
      %p99 = por %p97, %p98
      %p100 = scmp.ne.s32.totalorder %s92, %s94
      %p101 = scmp.eq.s32.totalorder %s37, 1
      %p102 = por %p100, %p101
      %p103 = scmp.ne.s32.totalorder %s94, %s95
      %p104 = scmp.eq.s32.totalorder %s37, 0
      %p105 = por %p103, %p104
      %p106 = scmp.ne.s32.totalorder %s94, %s95
      %p107 = scmp.eq.s32.totalorder %s38, 1
      %p108 = por %p106, %p107
      %p110 = scmp.ne.s32.totalorder %s95, %s109
      %p111 = scmp.eq.s32.totalorder %s38, 0
      %p112 = por %p110, %p111
      %s114 = sadd.s32 %s113, 1
      %p117 = scmp.eq.s32.totalorder %s32, 1
      %p118 = scmp.ne.s32.totalorder %s113, %s115
      %p119 = scmp.eq.s32.totalorder %s32, 0
      %p120 = por %p118, %p119
      %p121 = scmp.ne.s32.totalorder %s113, %s115
      %p122 = scmp.eq.s32.totalorder %s37, 1
      %p123 = por %p121, %p122
      %p124 = scmp.ne.s32.totalorder %s115, %s116
      %p125 = scmp.eq.s32.totalorder %s37, 0
      %p126 = por %p124, %p125
      %p127 = scmp.ne.s32.totalorder %s115, %s116
      %p128 = scmp.eq.s32.totalorder %s38, 1
      %p129 = por %p127, %p128
      %p131 = scmp.ne.s32.totalorder %s116, %s130
      %p132 = scmp.eq.s32.totalorder %s38, 0
      %p133 = por %p131, %p132
      %s135 = sadd.s32 %s134, 1
      %p138 = scmp.eq.s32.totalorder %s32, 1
      %p139 = scmp.ne.s32.totalorder %s134, %s136
      %p140 = scmp.eq.s32.totalorder %s32, 0
      %p141 = por %p139, %p140
      %p142 = scmp.ne.s32.totalorder %s134, %s136
      %p143 = scmp.eq.s32.totalorder %s37, 1
      %p144 = por %p142, %p143
      %p145 = scmp.ne.s32.totalorder %s136, %s137
      %p146 = scmp.eq.s32.totalorder %s37, 0
      %p147 = por %p145, %p146
      %p148 = scmp.ne.s32.totalorder %s136, %s137
      %p149 = scmp.eq.s32.totalorder %s38, 1
      %p150 = por %p148, %p149
      %p152 = scmp.ne.s32.totalorder %s137, %s151
      %p153 = scmp.eq.s32.totalorder %s38, 0
      %p154 = por %p152, %p153
      %s156 = sadd.s32 %s155, 1
      %p159 = scmp.eq.s32.totalorder %s32, 1
      %p160 = scmp.ne.s32.totalorder %s155, %s157
      %p161 = scmp.eq.s32.totalorder %s32, 0
      %p162 = por %p160, %p161
      %p163 = scmp.ne.s32.totalorder %s155, %s157
      %p164 = scmp.eq.s32.totalorder %s37, 1
      %p165 = por %p163, %p164
      %p166 = scmp.ne.s32.totalorder %s157, %s158
      %p167 = scmp.eq.s32.totalorder %s37, 0
      %p168 = por %p166, %p167
      %p169 = scmp.ne.s32.totalorder %s157, %s158
      %p170 = scmp.eq.s32.totalorder %s38, 1
      %p171 = por %p169, %p170
      %p173 = scmp.ne.s32.totalorder %s158, %s172
      %p174 = scmp.eq.s32.totalorder %s38, 0
      %p175 = por %p173, %p174
      %s177 = sadd.s32 %s176, 1
      %p180 = scmp.eq.s32.totalorder %s32, 1
      %p181 = scmp.ne.s32.totalorder %s176, %s178
      %p182 = scmp.eq.s32.totalorder %s32, 0
      %p183 = por %p181, %p182
      %p184 = scmp.ne.s32.totalorder %s176, %s178
      %p185 = scmp.eq.s32.totalorder %s37, 1
      %p186 = por %p184, %p185
      %p187 = scmp.ne.s32.totalorder %s178, %s179
      %p188 = scmp.eq.s32.totalorder %s37, 0
      %p189 = por %p187, %p188
      %p190 = scmp.ne.s32.totalorder %s178, %s179
      %p191 = scmp.eq.s32.totalorder %s38, 1
      %p192 = por %p190, %p191
      %p194 = scmp.ne.s32.totalorder %s179, %s193
      %p195 = scmp.eq.s32.totalorder %s38, 0
      %p196 = por %p194, %p195
      %s198 = sadd.s32 %s197, 1
      %p201 = scmp.eq.s32.totalorder %s32, 1
      %p202 = scmp.ne.s32.totalorder %s197, %s199
      %p203 = scmp.eq.s32.totalorder %s32, 0
      %p204 = por %p202, %p203
      %p205 = scmp.ne.s32.totalorder %s197, %s199
      %p206 = scmp.eq.s32.totalorder %s37, 1
      %p207 = por %p205, %p206
      %p208 = scmp.ne.s32.totalorder %s199, %s200
      %p209 = scmp.eq.s32.totalorder %s37, 0
      %p210 = por %p208, %p209
      %p211 = scmp.ne.s32.totalorder %s199, %s200
      %p212 = scmp.eq.s32.totalorder %s38, 1
      %p213 = por %p211, %p212
      %p215 = scmp.ne.s32.totalorder %s200, %s214
      %p216 = scmp.eq.s32.totalorder %s38, 0
      %p217 = por %p215, %p216
      %s219 = sadd.s32 %s218, 1
      %p222 = scmp.eq.s32.totalorder %s32, 1
      %p223 = scmp.ne.s32.totalorder %s218, %s220
      %p224 = scmp.eq.s32.totalorder %s32, 0
      %p225 = por %p223, %p224
      %p226 = scmp.ne.s32.totalorder %s218, %s220
      %p227 = scmp.eq.s32.totalorder %s37, 1
      %p228 = por %p226, %p227
      %p229 = scmp.ne.s32.totalorder %s220, %s221
      %p230 = scmp.eq.s32.totalorder %s37, 0
      %p231 = por %p229, %p230
      %p232 = scmp.ne.s32.totalorder %s220, %s221
      %p233 = scmp.eq.s32.totalorder %s38, 1
      %p234 = por %p232, %p233
      %p236 = scmp.ne.s32.totalorder %s221, %s235
      %p237 = scmp.eq.s32.totalorder %s38, 0
      %p238 = por %p236, %p237
      %s240 = sadd.s32 %s239, 1
      %p243 = scmp.eq.s32.totalorder %s32, 1
      %p244 = scmp.ne.s32.totalorder %s239, %s241
      %p245 = scmp.eq.s32.totalorder %s32, 0
      %p246 = por %p244, %p245
      %p247 = scmp.ne.s32.totalorder %s239, %s241
      %p248 = scmp.eq.s32.totalorder %s37, 1
      %p249 = por %p247, %p248
      %p250 = scmp.ne.s32.totalorder %s241, %s242
      %p251 = scmp.eq.s32.totalorder %s37, 0
      %p252 = por %p250, %p251
      %p253 = scmp.ne.s32.totalorder %s241, %s242
      %p254 = scmp.eq.s32.totalorder %s38, 1
      %p255 = por %p253, %p254
      %p257 = scmp.ne.s32.totalorder %s242, %s256
      %p258 = scmp.eq.s32.totalorder %s38, 0
      %p259 = por %p257, %p258
      %s260 = ssub.s32 %s32, %s39
      %p261 = scmp.eq.s32.totalorder %s260, 0
      %s263 = sadd.s32 %s262, 1
      %s264 = scalar_select %p261, %s262, %s263
      %p267 = pneg %p261
      %p268 = scmp.eq.s32.totalorder %s32, 1
      %p269 = por %p267, %p268
      %p270 = scmp.ne.s32.totalorder %s262, %s265
      %p271 = scmp.eq.s32.totalorder %s32, 0
      %p272 = por %p270, %p271
      %p273 = scmp.ne.s32.totalorder %s262, %s265
      %p274 = scmp.eq.s32.totalorder %s37, 1
      %p275 = por %p273, %p274
      %p276 = scmp.ne.s32.totalorder %s265, %s266
      %p277 = scmp.eq.s32.totalorder %s37, 0
      %p278 = por %p276, %p277
      %p279 = scmp.ne.s32.totalorder %s265, %s266
      %p280 = scmp.eq.s32.totalorder %s38, 1
      %p281 = por %p279, %p280
      %p283 = scmp.ne.s32.totalorder %s266, %s282
      %p284 = scmp.eq.s32.totalorder %s38, 0
      %p285 = por %p283, %p284
      %s286 = ssub.s32 %s32, %s39
      %p287 = scmp.eq.s32.totalorder %s286, 0
      %s289 = sadd.s32 %s288, 1
      %s290 = scalar_select %p287, %s288, %s289
      %p293 = pneg %p287
      %p294 = scmp.eq.s32.totalorder %s32, 1
      %p295 = por %p293, %p294
      %p296 = scmp.ne.s32.totalorder %s288, %s291
      %p297 = scmp.eq.s32.totalorder %s32, 0
      %p298 = por %p296, %p297
      %p299 = scmp.ne.s32.totalorder %s288, %s291
      %p300 = scmp.eq.s32.totalorder %s37, 1
      %p301 = por %p299, %p300
      %p302 = scmp.ne.s32.totalorder %s291, %s292
      %p303 = scmp.eq.s32.totalorder %s37, 0
      %p304 = por %p302, %p303
      %p305 = scmp.ne.s32.totalorder %s291, %s292
      %p306 = scmp.eq.s32.totalorder %s38, 1
      %p307 = por %p305, %p306
      %p309 = scmp.ne.s32.totalorder %s292, %s308
      %p310 = scmp.eq.s32.totalorder %s38, 0
      %p311 = por %p309, %p310
      %p312 = scmp.le.s32.totalorder 1, %s32
      %p313 = scmp.lt.s32.totalorder %s32, 3
      %p314 = pnand %p312, %p313
      %p315 = pneg %p314
      // Predicated region
      $region9: #{_interaction_encoder.1} parent=5 // pred_check
        _
      $region10: #{_interaction_encoder.1} parent=5 // pred_check_branch
        %317 = sbr.rel (%p314) target = $region12
      $region11: #{_interaction_encoder.1} parent=5 // pred_region
        %s318 = ssub.s32 %s32, 1
        // Predicated region
        $region13: #{_interaction_encoder.1} parent=11 // pred_check
          %p319 = pneg %p105
        $region14: #{_interaction_encoder.1} parent=11 // pred_check_branch
          %321 = sbr.rel (%p319) target = $region16
        $region15: #{_interaction_encoder.1} parent=11 // pred_region
          %s323 = ssub.s32 1536, 1536
          %324 = vsyncadd [#allocation6], %s323
          %s325 = sshll.u32 [#allocation7], 4
          %s326 = int_to_ptr.vmem [resolvable:$true] %s325
          %331 = dma.hbm_to_vmem [thread:$0]  %s2, 1536, %s326, [#allocation6], 128, 128, 8
        $region16: #{_interaction_encoder.1} parent=11 // pred_fallthru
          _
        // Predicated region
        $region17: #{_interaction_encoder.1} parent=11 // pred_check
          %p332 = pneg %p126
        $region18: #{_interaction_encoder.1} parent=11 // pred_check_branch
          %334 = sbr.rel (%p332) target = $region20
        $region19: #{_interaction_encoder.1} parent=11 // pred_region
          _
        $region20: #{_interaction_encoder.1} parent=11 // pred_fallthru
          _
        // Predicated region
        $region21: #{_interaction_encoder.1} parent=11 // pred_check
          %p335 = pneg %p147
        $region22: #{_interaction_encoder.1} parent=11 // pred_check_branch
          %337 = sbr.rel (%p335) target = $region24
        $region23: #{_interaction_encoder.1} parent=11 // pred_region
          %s339 = ssub.s32 1536, 1536
          %340 = vsyncadd [#allocation9], %s339
          %s341 = sshll.u32 [#allocation8], 4
          %s342 = int_to_ptr.vmem [resolvable:$true] %s341
          %347 = dma.hbm_to_vmem [thread:$0]  %s4, 1536, %s342, [#allocation9], 128, 128, 8
        $region24: #{_interaction_encoder.1} parent=11 // pred_fallthru
          _
        // Predicated region
        $region25: #{_interaction_encoder.1} parent=11 // pred_check
          %p348 = pneg %p168
        $region26: #{_interaction_encoder.1} parent=11 // pred_check_branch
          %350 = sbr.rel (%p348) target = $region28
        $region27: #{_interaction_encoder.1} parent=11 // pred_region
          _
        $region28: #{_interaction_encoder.1} parent=11 // pred_fallthru
          _
        // Predicated region
        $region29: #{_interaction_encoder.1} parent=11 // pred_check
          %p351 = pneg %p189
        $region30: #{_interaction_encoder.1} parent=11 // pred_check_branch
          %353 = sbr.rel (%p351) target = $region32
        $region31: #{_interaction_encoder.1} parent=11 // pred_region
          %s355 = ssub.s32 1536, 1536
          %356 = vsyncadd [#allocation9], %s355
          %s357 = sshll.u32 [#allocation10], 4
          %s358 = int_to_ptr.vmem [resolvable:$true] %s357
          %363 = dma.hbm_to_vmem [thread:$0]  %s6, 1536, %s358, [#allocation9], 128, 128, 8
        $region32: #{_interaction_encoder.1} parent=11 // pred_fallthru
          _
        // Predicated region
        $region33: #{_interaction_encoder.1} parent=11 // pred_check
          %p364 = pneg %p210
        $region34: #{_interaction_encoder.1} parent=11 // pred_check_branch
          %366 = sbr.rel (%p364) target = $region36
        $region35: #{_interaction_encoder.1} parent=11 // pred_region
          _
        $region36: #{_interaction_encoder.1} parent=11 // pred_fallthru
          _
        // Predicated region
        $region37: #{_interaction_encoder.1} parent=11 // pred_check
          %p367 = pneg %p231
        $region38: #{_interaction_encoder.1} parent=11 // pred_check_branch
          %369 = sbr.rel (%p367) target = $region40
        $region39: #{_interaction_encoder.1} parent=11 // pred_region
          %s371 = ssub.s32 1536, 1536
          %372 = vsyncadd [#allocation12], %s371
          %s373 = sshll.u32 [#allocation11], 4
          %s374 = int_to_ptr.vmem [resolvable:$true] %s373
          %379 = dma.hbm_to_vmem [thread:$0]  %s8, 1536, %s374, [#allocation12], 128, 128, 8
        $region40: #{_interaction_encoder.1} parent=11 // pred_fallthru
          _
        // Predicated region
        $region41: #{_interaction_encoder.1} parent=11 // pred_check
          %p380 = pneg %p252
        $region42: #{_interaction_encoder.1} parent=11 // pred_check_branch
          %382 = sbr.rel (%p380) target = $region44
        $region43: #{_interaction_encoder.1} parent=11 // pred_region
          _
        $region44: #{_interaction_encoder.1} parent=11 // pred_fallthru
          _
      $region12: #{_interaction_encoder.1} parent=5 // pred_fallthru
        _
      %p383 = scmp.lt.s32.totalorder %s32, 2
      // Predicated region
      $region45: #{_interaction_encoder.1} parent=5 // pred_check
        %p384 = pneg %p383
      $region46: #{_interaction_encoder.1} parent=5 // pred_check_branch
        %386 = sbr.rel (%p384) target = $region48
      $region47: #{_interaction_encoder.1} parent=5 // pred_region
        // Predicated region
        $region49: #{_interaction_encoder.1} parent=47 // pred_check
          %p387 = pneg %p52
        $region50: #{_interaction_encoder.1} parent=47 // pred_check_branch
          %389 = sbr.rel (%p387) target = $region52
        $region51: #{_interaction_encoder.1} parent=47 // pred_region
          %s390 = sand.u32 %s42, 1
          %s391 = scalar_lea.sflag [#allocation3], %s390
          %s392 = sand.u32 %s42, 1
          %s393 = smul.addr %s392, 8
          %s394 = scalar_lea.vmem [#allocation2], %s393
          %s396 = ssub.s32 128, 128
          %397 = vsyncadd %s391, %s396
          %s398 = smul.addr %s32, 128
          %s399 = scalar_lea.hbm %s0, %s398
          %s401 = sshll.u32 %s394, 4
          %s402 = int_to_ptr.vmem [resolvable:$true] %s401
          %404 = dma.hbm_to_vmem [thread:$0]  %s399, 128, %s402, %s391
        $region52: #{_interaction_encoder.1} parent=47 // pred_fallthru
          _
        // Predicated region
        $region53: #{_interaction_encoder.1} parent=47 // pred_check
          %p405 = pneg %p78
        $region54: #{_interaction_encoder.1} parent=47 // pred_check_branch
          %407 = sbr.rel (%p405) target = $region56
        $region55: #{_interaction_encoder.1} parent=47 // pred_region
          %s408 = sand.u32 %s32, 1
          %s409 = scalar_lea.sflag [#allocation6], %s408
          %s410 = sand.u32 %s68, 1
          %s411 = smul.addr %s410, 8
          %s412 = scalar_lea.vmem [#allocation5], %s411
          %s414 = ssub.s32 128, 128
          %415 = vsyncadd %s409, %s414
          %s416 = smul.addr %s32, 128
          %s417 = scalar_lea.hbm %s1, %s416
          %s419 = sshll.u32 %s412, 4
          %s420 = int_to_ptr.vmem [resolvable:$true] %s419
          %422 = dma.hbm_to_vmem [thread:$0]  %s417, 128, %s420, %s409
        $region56: #{_interaction_encoder.1} parent=47 // pred_fallthru
          _
      $region48: #{_interaction_encoder.1} parent=5 // pred_fallthru
        _
      %p423 = scmp.le.s32.totalorder 1, %s32
      %p424 = scmp.lt.s32.totalorder %s32, 3
      %p425 = pnand %p423, %p424
      %p426 = pneg %p425
      // Predicated region
      $region57: #{_interaction_encoder.1} parent=5 // pred_check
        _
      $region58: #{_interaction_encoder.1} parent=5 // pred_check_branch
        %428 = sbr.rel (%p425) target = $region60
      $region59: #{_interaction_encoder.1} parent=5 // pred_region
        %s429 = ssub.s32 %s32, 1
        %s430 = sand.u32 %s45, 1
        %s431 = scalar_lea.sflag [#allocation3], %s430
        %s432 = sand.u32 %s45, 1
        %s433 = smul.addr %s432, 8
        %s434 = scalar_lea.vmem [#allocation2], %s433
        // Predicated region
        $region61: #{_interaction_encoder.1} parent=59 // pred_check
          %p435 = pneg %p58
        $region62: #{_interaction_encoder.1} parent=59 // pred_check_branch
          %437 = sbr.rel (%p435) target = $region64
        $region63: #{_interaction_encoder.1} parent=59 // pred_region
          %438 = dma.done %s431, 128
        $region64: #{_interaction_encoder.1} parent=59 // pred_fallthru
          _
        %s439 = sand.u32 %s37, 1
        %s440 = scalar_lea.sflag [#allocation6], %s439
        %s441 = sand.u32 %s71, 1
        %s442 = smul.addr %s441, 8
        %s443 = scalar_lea.vmem [#allocation5], %s442
        // Predicated region
        $region65: #{_interaction_encoder.1} parent=59 // pred_check
          %p444 = pneg %p84
        $region66: #{_interaction_encoder.1} parent=59 // pred_check_branch
          %446 = sbr.rel (%p444) target = $region68
        $region67: #{_interaction_encoder.1} parent=59 // pred_region
          %447 = dma.done %s440, 128
        $region68: #{_interaction_encoder.1} parent=59 // pred_fallthru
          _
        // Predicated region
        $region69: #{_interaction_encoder.1} parent=59 // pred_check
          %p448 = pneg %p105
        $region70: #{_interaction_encoder.1} parent=59 // pred_check_branch
          %450 = sbr.rel (%p448) target = $region72
        $region71: #{_interaction_encoder.1} parent=59 // pred_region
          %451 = dma.done [#allocation6], 1536
        $region72: #{_interaction_encoder.1} parent=59 // pred_fallthru
          _
        // Predicated region
        $region73: #{_interaction_encoder.1} parent=59 // pred_check
          %p452 = pneg %p147
        $region74: #{_interaction_encoder.1} parent=59 // pred_check_branch
          %454 = sbr.rel (%p452) target = $region76
        $region75: #{_interaction_encoder.1} parent=59 // pred_region
          %455 = dma.done [#allocation9], 1536
        $region76: #{_interaction_encoder.1} parent=59 // pred_fallthru
          _
        // Predicated region
        $region77: #{_interaction_encoder.1} parent=59 // pred_check
          %p456 = pneg %p189
        $region78: #{_interaction_encoder.1} parent=59 // pred_check_branch
          %458 = sbr.rel (%p456) target = $region80
        $region79: #{_interaction_encoder.1} parent=59 // pred_region
          %459 = dma.done [#allocation9], 1536
        $region80: #{_interaction_encoder.1} parent=59 // pred_fallthru
          _
        // Predicated region
        $region81: #{_interaction_encoder.1} parent=59 // pred_check
          %p460 = pneg %p231
        $region82: #{_interaction_encoder.1} parent=59 // pred_check_branch
          %462 = sbr.rel (%p460) target = $region84
        $region83: #{_interaction_encoder.1} parent=59 // pred_region
          %463 = dma.done [#allocation12], 1536
        $region84: #{_interaction_encoder.1} parent=59 // pred_fallthru
          _
        %s464 = sand.u32 %s45, 1
        %s465 = scalar_lea.sflag [#allocation3], %s464
        %s466 = sand.u32 %s45, 1
        %s467 = smul.addr %s466, 8
        %s468 = scalar_lea.vmem [#allocation2], %s467
        %p469 = pneg %p58
        %p470 = pneg %p55
        %s471 = sand.u32 %s37, 1
        %s472 = scalar_lea.sflag [#allocation6], %s471
        %s473 = sand.u32 %s71, 1
        %s474 = smul.addr %s473, 8
        %s475 = scalar_lea.vmem [#allocation5], %s474
        %p476 = pneg %p84
        %p477 = pneg %p81
        %p478 = pneg %p105
        %p479 = pneg %p102
        %p480 = pneg %p126
        %p481 = pneg %p123
        %p482 = pneg %p147
        %p483 = pneg %p144
        %p484 = pneg %p168
        %p485 = pneg %p165
        %p486 = pneg %p189
        %p487 = pneg %p186
        %p488 = pneg %p210
        %p489 = pneg %p207
        %p490 = pneg %p231
        %p491 = pneg %p228
        %p492 = pneg %p252
        %p493 = pneg %p249
        %p494 = pneg %p278
        %p495 = pneg %p275
        %s496 = sand.u32 %s265, 1
        %s497 = scalar_lea.sflag [#allocation4], %s496
        %s498 = sand.u32 %s265, 1
        %s499 = smul.addr %s498, 8
        %s500 = scalar_lea.vmem [#allocation13], %s499
        %p501 = pneg %p304
        %p502 = pneg %p301
        %s503 = sand.u32 %s291, 1
        %s504 = scalar_lea.sflag [#allocation15], %s503
        %s505 = sand.u32 %s291, 1
        %s506 = smul.addr %s505, 8
        %s507 = scalar_lea.vmem [#allocation14], %s506
        %v508 = vld [vmem:[%s443] sm:$0xff]
        %v509 = vld [vmem:[%s434] sm:$0xff]
        %v510 = vld [vmem:[#allocation7] sm:$0xff]
        %v511 = vld [vmem:[#allocation7 + $0x8] sm:$0xff]
        %v512 = vld [vmem:[#allocation7 + $0x10] sm:$0xff]
        %v513 = vld [vmem:[#allocation7 + $0x18] sm:$0xff]
        %v514 = vld [vmem:[%s3] sm:$0x1]
        %v515 = vld [vmem:[#allocation8] sm:$0xff]
        %v516 = vld [vmem:[#allocation8 + $0x8] sm:$0xff]
        %v517 = vld [vmem:[#allocation8 + $0x10] sm:$0xff]
        %v518 = vld [vmem:[#allocation8 + $0x18] sm:$0xff]
        %v519 = vld [vmem:[%s5] sm:$0x1]
        %v520 = vld [vmem:[#allocation10] sm:$0xff]
        %v521 = vld [vmem:[#allocation10 + $0x8] sm:$0xff]
        %v522 = vld [vmem:[#allocation10 + $0x10] sm:$0xff]
        %v523 = vld [vmem:[#allocation10 + $0x18] sm:$0xff]
        %v524 = vld [vmem:[%s7] sm:$0x1]
        %v525 = vld [vmem:[#allocation11] sm:$0xff]
        %v526 = vld [vmem:[#allocation11 + $0x8] sm:$0xff]
        %v527 = vld [vmem:[#allocation11 + $0x10] sm:$0xff]
        %v528 = vld [vmem:[#allocation11 + $0x18] sm:$0xff]
        %v529 = vld [vmem:[%s9] sm:$0x1]
        %v531 = vlaneseq
        %v532 = vshrl.u32 %v531, 7
        %v533 = vsub.s32 0, %v532
        %v534 = vrot.slane %v514, %v533
        %vm536 = vcmask 261120
        %v538 = vsel %vm536, %v509, 0
        %540 = vmatprep.subr.mxu0 0.0
        %541 = vmatpush1.msra.mxu0 0.0
        %542 = vmatprep.subr.mxu0 0.0
        %543 = vmatpush1.msra.mxu0 0.0
        %544 = vmatprep.subr.mxu0 0.0
        %545 = vmatpush1.msra.mxu0 0.0
        %546 = vmatprep.subr.mxu0 0.0
        %547 = vmatpush1.msra.mxu0 0.0
        %548 = vmatprep.subr.mxu0 0.0
        %549 = vmatpush1.msra.mxu0 0.0
        %550 = vmatprep.subr.mxu0 0.0
        %551 = vmatpush1.msra.mxu0 0.0
        %552 = vmatprep.subr.mxu0 0.0
        %553 = vmatpush1.msra.mxu0 0.0
        %554 = vmatprep.subr.mxu0 0.0
        %555 = vmatpush1.msra.mxu0 0.0
        %556 = vmatprep.subr.mxu0 0.0
        %557 = vmatpush1.msra.mxu0 0.0
        %558 = vmatprep.subr.mxu0 0.0
        %559 = vmatpush1.msra.mxu0 0.0
        %560 = vmatprep.subr.mxu0 0.0
        %561 = vmatpush1.msra.mxu0 0.0
        %562 = vmatprep.subr.mxu0 0.0
        %563 = vmatpush1.msra.mxu0 0.0
        %564 = vmatprep.subr.mxu0 0.0
        %565 = vmatpush1.msra.mxu0 %v513
        %566 = vmatprep.subr.mxu0 0.0
        %567 = vmatpush1.msra.mxu0 %v512
        %568 = vmatprep.subr.mxu0 0.0
        %569 = vmatpush1.msra.mxu0 %v511
        %570 = vmatprep.subr.mxu0 0.0
        %571 = vmatpush1.msra.mxu0 %v510
        %572 = vmatprep.subr.mxu0 0.0
        %573 = vmatpush2.msra.mxu0 0.0
        %574 = vmatprep.subr.mxu0 0.0
        %575 = vmatpush2.msra.mxu0 0.0
        %576 = vmatprep.subr.mxu0 0.0
        %577 = vmatpush2.msra.mxu0 0.0
        %578 = vmatprep.subr.mxu0 0.0
        %579 = vmatpush2.msra.mxu0 0.0
        %580 = vmatprep.subr.mxu0 0.0
        %581 = vmatpush2.msra.mxu0 0.0
        %582 = vmatprep.subr.mxu0 0.0
        %583 = vmatpush2.msra.mxu0 0.0
        %584 = vmatprep.subr.mxu0 0.0
        %585 = vmatpush2.msra.mxu0 0.0
        %586 = vmatprep.subr.mxu0 0.0
        %587 = vmatpush2.msra.mxu0 0.0
        %588 = vmatprep.subr.mxu0 0.0
        %589 = vmatpush2.msra.mxu0 0.0
        %590 = vmatprep.subr.mxu0 0.0
        %591 = vmatpush2.msra.mxu0 0.0
        %592 = vmatprep.subr.mxu0 0.0
        %593 = vmatpush2.msra.mxu0 0.0
        %594 = vmatprep.subr.mxu0 0.0
        %595 = vmatpush2.msra.mxu0 0.0
        %596 = vmatprep.subr.mxu0 0.0
        %597 = vmatpush2.msra.mxu0 0.0
        %598 = vmatprep.subr.mxu0 0.0
        %599 = vmatpush2.msra.mxu0 0.0
        %600 = vmatprep.subr.mxu0 0.0
        %601 = vmatpush2.msra.mxu0 0.0
        %602 = vmatprep.subr.mxu0 0.0
        %603 = vmatpush2.msra.mxu0 0.0
        %604 = vmatprep.mubr.f32.mxu0 0.0
        %605 = vmatmul.mubr.f32.gmra.mxu0 %v538
        %v606 = vpop.f32.mrf.mxu0
        %v607 = vadd.f32 %v534, %v606
        %v608 = vpop.f32.mrf.mxu0
        %609 = vdwg.mxu0
        %v610 = vmax.f32 %v607, 0.0
        %v612 = vlaneseq
        %v613 = vshrl.u32 %v612, 7
        %v614 = vsub.s32 0, %v613
        %v615 = vrot.slane %v519, %v614
        %v618 = vsel %vm536, %v610, 0
        %620 = vmatprep.subr.mxu0 0.0
        %621 = vmatpush1.msra.mxu0 0.0
        %622 = vmatprep.subr.mxu0 0.0
        %623 = vmatpush1.msra.mxu0 0.0
        %624 = vmatprep.subr.mxu0 0.0
        %625 = vmatpush1.msra.mxu0 0.0
        %626 = vmatprep.subr.mxu0 0.0
        %627 = vmatpush1.msra.mxu0 0.0
        %628 = vmatprep.subr.mxu0 0.0
        %629 = vmatpush1.msra.mxu0 0.0
        %630 = vmatprep.subr.mxu0 0.0
        %631 = vmatpush1.msra.mxu0 0.0
        %632 = vmatprep.subr.mxu0 0.0
        %633 = vmatpush1.msra.mxu0 0.0
        %634 = vmatprep.subr.mxu0 0.0
        %635 = vmatpush1.msra.mxu0 0.0
        %636 = vmatprep.subr.mxu0 0.0
        %637 = vmatpush1.msra.mxu0 0.0
        %638 = vmatprep.subr.mxu0 0.0
        %639 = vmatpush1.msra.mxu0 0.0
        %640 = vmatprep.subr.mxu0 0.0
        %641 = vmatpush1.msra.mxu0 0.0
        %642 = vmatprep.subr.mxu0 0.0
        %643 = vmatpush1.msra.mxu0 0.0
        %644 = vmatprep.subr.mxu0 0.0
        %645 = vmatpush1.msra.mxu0 %v518
        %646 = vmatprep.subr.mxu0 0.0
        %647 = vmatpush1.msra.mxu0 %v517
        %648 = vmatprep.subr.mxu0 0.0
        %649 = vmatpush1.msra.mxu0 %v516
        %650 = vmatprep.subr.mxu0 0.0
        %651 = vmatpush1.msra.mxu0 %v515
        %652 = vmatprep.subr.mxu0 0.0
        %653 = vmatpush2.msra.mxu0 0.0
        %654 = vmatprep.subr.mxu0 0.0
        %655 = vmatpush2.msra.mxu0 0.0
        %656 = vmatprep.subr.mxu0 0.0
        %657 = vmatpush2.msra.mxu0 0.0
        %658 = vmatprep.subr.mxu0 0.0
        %659 = vmatpush2.msra.mxu0 0.0
        %660 = vmatprep.subr.mxu0 0.0
        %661 = vmatpush2.msra.mxu0 0.0
        %662 = vmatprep.subr.mxu0 0.0
        %663 = vmatpush2.msra.mxu0 0.0
        %664 = vmatprep.subr.mxu0 0.0
        %665 = vmatpush2.msra.mxu0 0.0
        %666 = vmatprep.subr.mxu0 0.0
        %667 = vmatpush2.msra.mxu0 0.0
        %668 = vmatprep.subr.mxu0 0.0
        %669 = vmatpush2.msra.mxu0 0.0
        %670 = vmatprep.subr.mxu0 0.0
        %671 = vmatpush2.msra.mxu0 0.0
        %672 = vmatprep.subr.mxu0 0.0
        %673 = vmatpush2.msra.mxu0 0.0
        %674 = vmatprep.subr.mxu0 0.0
        %675 = vmatpush2.msra.mxu0 0.0
        %676 = vmatprep.subr.mxu0 0.0
        %677 = vmatpush2.msra.mxu0 0.0
        %678 = vmatprep.subr.mxu0 0.0
        %679 = vmatpush2.msra.mxu0 0.0
        %680 = vmatprep.subr.mxu0 0.0
        %681 = vmatpush2.msra.mxu0 0.0
        %682 = vmatprep.subr.mxu0 0.0
        %683 = vmatpush2.msra.mxu0 0.0
        %684 = vmatprep.mubr.f32.mxu0 0.0
        %685 = vmatmul.mubr.f32.gmra.mxu0 %v618
        %v686 = vpop.f32.mrf.mxu0
        %v687 = vadd.f32 %v615, %v686
        %v688 = vpop.f32.mrf.mxu0
        %689 = vdwg.mxu0
        %v691 = vlaneseq
        %v692 = vshrl.u32 %v691, 7
        %v693 = vsub.s32 0, %v692
        %v694 = vrot.slane %v524, %v693
        %v697 = vsel %vm536, %v508, 0
        %699 = vmatprep.subr.mxu0 0.0
        %700 = vmatpush1.msra.mxu0 0.0
        %701 = vmatprep.subr.mxu0 0.0
        %702 = vmatpush1.msra.mxu0 0.0
        %703 = vmatprep.subr.mxu0 0.0
        %704 = vmatpush1.msra.mxu0 0.0
        %705 = vmatprep.subr.mxu0 0.0
        %706 = vmatpush1.msra.mxu0 0.0
        %707 = vmatprep.subr.mxu0 0.0
        %708 = vmatpush1.msra.mxu0 0.0
        %709 = vmatprep.subr.mxu0 0.0
        %710 = vmatpush1.msra.mxu0 0.0
        %711 = vmatprep.subr.mxu0 0.0
        %712 = vmatpush1.msra.mxu0 0.0
        %713 = vmatprep.subr.mxu0 0.0
        %714 = vmatpush1.msra.mxu0 0.0
        %715 = vmatprep.subr.mxu0 0.0
        %716 = vmatpush1.msra.mxu0 0.0
        %717 = vmatprep.subr.mxu0 0.0
        %718 = vmatpush1.msra.mxu0 0.0
        %719 = vmatprep.subr.mxu0 0.0
        %720 = vmatpush1.msra.mxu0 0.0
        %721 = vmatprep.subr.mxu0 0.0
        %722 = vmatpush1.msra.mxu0 0.0
        %723 = vmatprep.subr.mxu0 0.0
        %724 = vmatpush1.msra.mxu0 %v523
        %725 = vmatprep.subr.mxu0 0.0
        %726 = vmatpush1.msra.mxu0 %v522
        %727 = vmatprep.subr.mxu0 0.0
        %728 = vmatpush1.msra.mxu0 %v521
        %729 = vmatprep.subr.mxu0 0.0
        %730 = vmatpush1.msra.mxu0 %v520
        %731 = vmatprep.subr.mxu0 0.0
        %732 = vmatpush2.msra.mxu0 0.0
        %733 = vmatprep.subr.mxu0 0.0
        %734 = vmatpush2.msra.mxu0 0.0
        %735 = vmatprep.subr.mxu0 0.0
        %736 = vmatpush2.msra.mxu0 0.0
        %737 = vmatprep.subr.mxu0 0.0
        %738 = vmatpush2.msra.mxu0 0.0
        %739 = vmatprep.subr.mxu0 0.0
        %740 = vmatpush2.msra.mxu0 0.0
        %741 = vmatprep.subr.mxu0 0.0
        %742 = vmatpush2.msra.mxu0 0.0
        %743 = vmatprep.subr.mxu0 0.0
        %744 = vmatpush2.msra.mxu0 0.0
        %745 = vmatprep.subr.mxu0 0.0
        %746 = vmatpush2.msra.mxu0 0.0
        %747 = vmatprep.subr.mxu0 0.0
        %748 = vmatpush2.msra.mxu0 0.0
        %749 = vmatprep.subr.mxu0 0.0
        %750 = vmatpush2.msra.mxu0 0.0
        %751 = vmatprep.subr.mxu0 0.0
        %752 = vmatpush2.msra.mxu0 0.0
        %753 = vmatprep.subr.mxu0 0.0
        %754 = vmatpush2.msra.mxu0 0.0
        %755 = vmatprep.subr.mxu0 0.0
        %756 = vmatpush2.msra.mxu0 0.0
        %757 = vmatprep.subr.mxu0 0.0
        %758 = vmatpush2.msra.mxu0 0.0
        %759 = vmatprep.subr.mxu0 0.0
        %760 = vmatpush2.msra.mxu0 0.0
        %761 = vmatprep.subr.mxu0 0.0
        %762 = vmatpush2.msra.mxu0 0.0
        %763 = vmatprep.mubr.f32.mxu0 0.0
        %764 = vmatmul.mubr.f32.gmra.mxu0 %v538
        %v765 = vpop.f32.mrf.mxu0
        %v766 = vadd.f32 %v694, %v765
        %v767 = vpop.f32.mrf.mxu0
        %768 = vmatprep.mubr.f32.mxu0 0.0
        %769 = vmatmul.mubr.f32.gmra.mxu0 %v697
        %v770 = vpop.f32.mrf.mxu0
        %v771 = vadd.f32 %v694, %v770
        %v772 = vpop.f32.mrf.mxu0
        %773 = vdwg.mxu0
        %v774 = vmax.f32 %v766, 0.0
        %v775 = vmax.f32 %v771, 0.0
        %v777 = vlaneseq
        %v778 = vshrl.u32 %v777, 7
        %v779 = vsub.s32 0, %v778
        %v780 = vrot.slane %v529, %v779
        %v783 = vsel %vm536, %v774, 0
        %v786 = vsel %vm536, %v775, 0
        %788 = vmatprep.subr.mxu0 0.0
        %789 = vmatpush1.msra.mxu0 0.0
        %790 = vmatprep.subr.mxu0 0.0
        %791 = vmatpush1.msra.mxu0 0.0
        %792 = vmatprep.subr.mxu0 0.0
        %793 = vmatpush1.msra.mxu0 0.0
        %794 = vmatprep.subr.mxu0 0.0
        %795 = vmatpush1.msra.mxu0 0.0
        %796 = vmatprep.subr.mxu0 0.0
        %797 = vmatpush1.msra.mxu0 0.0
        %798 = vmatprep.subr.mxu0 0.0
        %799 = vmatpush1.msra.mxu0 0.0
        %800 = vmatprep.subr.mxu0 0.0
        %801 = vmatpush1.msra.mxu0 0.0
        %802 = vmatprep.subr.mxu0 0.0
        %803 = vmatpush1.msra.mxu0 0.0
        %804 = vmatprep.subr.mxu0 0.0
        %805 = vmatpush1.msra.mxu0 0.0
        %806 = vmatprep.subr.mxu0 0.0
        %807 = vmatpush1.msra.mxu0 0.0
        %808 = vmatprep.subr.mxu0 0.0
        %809 = vmatpush1.msra.mxu0 0.0
        %810 = vmatprep.subr.mxu0 0.0
        %811 = vmatpush1.msra.mxu0 0.0
        %812 = vmatprep.subr.mxu0 0.0
        %813 = vmatpush1.msra.mxu0 %v528
        %814 = vmatprep.subr.mxu0 0.0
        %815 = vmatpush1.msra.mxu0 %v527
        %816 = vmatprep.subr.mxu0 0.0
        %817 = vmatpush1.msra.mxu0 %v526
        %818 = vmatprep.subr.mxu0 0.0
        %819 = vmatpush1.msra.mxu0 %v525
        %820 = vmatprep.subr.mxu0 0.0
        %821 = vmatpush2.msra.mxu0 0.0
        %822 = vmatprep.subr.mxu0 0.0
        %823 = vmatpush2.msra.mxu0 0.0
        %824 = vmatprep.subr.mxu0 0.0
        %825 = vmatpush2.msra.mxu0 0.0
        %826 = vmatprep.subr.mxu0 0.0
        %827 = vmatpush2.msra.mxu0 0.0
        %828 = vmatprep.subr.mxu0 0.0
        %829 = vmatpush2.msra.mxu0 0.0
        %830 = vmatprep.subr.mxu0 0.0
        %831 = vmatpush2.msra.mxu0 0.0
        %832 = vmatprep.subr.mxu0 0.0
        %833 = vmatpush2.msra.mxu0 0.0
        %834 = vmatprep.subr.mxu0 0.0
        %835 = vmatpush2.msra.mxu0 0.0
        %836 = vmatprep.subr.mxu0 0.0
        %837 = vmatpush2.msra.mxu0 0.0
        %838 = vmatprep.subr.mxu0 0.0
        %839 = vmatpush2.msra.mxu0 0.0
        %840 = vmatprep.subr.mxu0 0.0
        %841 = vmatpush2.msra.mxu0 0.0
        %842 = vmatprep.subr.mxu0 0.0
        %843 = vmatpush2.msra.mxu0 0.0
        %844 = vmatprep.subr.mxu0 0.0
        %845 = vmatpush2.msra.mxu0 0.0
        %846 = vmatprep.subr.mxu0 0.0
        %847 = vmatpush2.msra.mxu0 0.0
        %848 = vmatprep.subr.mxu0 0.0
        %849 = vmatpush2.msra.mxu0 0.0
        %850 = vmatprep.subr.mxu0 0.0
        %851 = vmatpush2.msra.mxu0 0.0
        %852 = vmatprep.mubr.f32.mxu0 0.0
        %853 = vmatmul.mubr.f32.gmra.mxu0 %v783
        %v854 = vpop.f32.mrf.mxu0
        %v855 = vadd.f32 %v780, %v854
        %v856 = vpop.f32.mrf.mxu0
        %857 = vmatprep.mubr.f32.mxu0 0.0
        %858 = vmatmul.mubr.f32.gmra.mxu0 %v786
        %v859 = vpop.f32.mrf.mxu0
        %v860 = vadd.f32 %v780, %v859
        %v861 = vpop.f32.mrf.mxu0
        %862 = vdwg.mxu0
        %v864 = vsel %vm536, %v687, 0
        %v867 = vsel %vm536, %v860, 0
        %v870 = vsel %vm536, %v855, 0
        %872 = vmatprep.subr.mxu0 0.0
        %873 = vmatpush1.xpose.msra.mxu0 0.0
        %874 = vmatprep.subr.mxu0 0.0
        %875 = vmatpush1.xpose.msra.mxu0 0.0
        %876 = vmatprep.subr.mxu0 0.0
        %877 = vmatpush1.xpose.msra.mxu0 0.0
        %878 = vmatprep.subr.mxu0 0.0
        %879 = vmatpush1.xpose.msra.mxu0 0.0
        %880 = vmatprep.subr.mxu0 0.0
        %881 = vmatpush1.xpose.msra.mxu0 0.0
        %882 = vmatprep.subr.mxu0 0.0
        %883 = vmatpush1.xpose.msra.mxu0 0.0
        %884 = vmatprep.subr.mxu0 0.0
        %885 = vmatpush1.xpose.msra.mxu0 0.0
        %886 = vmatprep.subr.mxu0 0.0
        %887 = vmatpush1.xpose.msra.mxu0 0.0
        %888 = vmatprep.subr.mxu0 0.0
        %889 = vmatpush1.xpose.msra.mxu0 0.0
        %890 = vmatprep.subr.mxu0 0.0
        %891 = vmatpush1.xpose.msra.mxu0 0.0
        %892 = vmatprep.subr.mxu0 0.0
        %893 = vmatpush1.xpose.msra.mxu0 0.0
        %894 = vmatprep.subr.mxu0 0.0
        %895 = vmatpush1.xpose.msra.mxu0 0.0
        %896 = vmatprep.subr.mxu0 0.0
        %897 = vmatpush1.xpose.msra.mxu0 0.0
        %898 = vmatprep.subr.mxu0 0.0
        %899 = vmatpush1.xpose.msra.mxu0 0.0
        %900 = vmatprep.subr.mxu0 0.0
        %901 = vmatpush1.xpose.msra.mxu0 %v870
        %902 = vmatprep.subr.mxu0 0.0
        %903 = vmatpush1.xpose.msra.mxu0 %v867
        %904 = vmatprep.subr.mxu0 0.0
        %905 = vmatpush2.xpose.msra.mxu0 0.0
        %906 = vmatprep.subr.mxu0 0.0
        %907 = vmatpush2.xpose.msra.mxu0 0.0
        %908 = vmatprep.subr.mxu0 0.0
        %909 = vmatpush2.xpose.msra.mxu0 0.0
        %910 = vmatprep.subr.mxu0 0.0
        %911 = vmatpush2.xpose.msra.mxu0 0.0
        %912 = vmatprep.subr.mxu0 0.0
        %913 = vmatpush2.xpose.msra.mxu0 0.0
        %914 = vmatprep.subr.mxu0 0.0
        %915 = vmatpush2.xpose.msra.mxu0 0.0
        %916 = vmatprep.subr.mxu0 0.0
        %917 = vmatpush2.xpose.msra.mxu0 0.0
        %918 = vmatprep.subr.mxu0 0.0
        %919 = vmatpush2.xpose.msra.mxu0 0.0
        %920 = vmatprep.subr.mxu0 0.0
        %921 = vmatpush2.xpose.msra.mxu0 0.0
        %922 = vmatprep.subr.mxu0 0.0
        %923 = vmatpush2.xpose.msra.mxu0 0.0
        %924 = vmatprep.subr.mxu0 0.0
        %925 = vmatpush2.xpose.msra.mxu0 0.0
        %926 = vmatprep.subr.mxu0 0.0
        %927 = vmatpush2.xpose.msra.mxu0 0.0
        %928 = vmatprep.subr.mxu0 0.0
        %929 = vmatpush2.xpose.msra.mxu0 0.0
        %930 = vmatprep.subr.mxu0 0.0
        %931 = vmatpush2.xpose.msra.mxu0 0.0
        %932 = vmatprep.subr.mxu0 0.0
        %933 = vmatpush2.xpose.msra.mxu0 0.0
        %934 = vmatprep.subr.mxu0 0.0
        %935 = vmatpush2.xpose.msra.mxu0 0.0
        %936 = vmatprep.mubr.f32.mxu0 0.0
        %937 = vmatmul.mubr.f32.gmra.mxu0 %v864
        %v938 = vpop.f32.mrf.mxu0
        %v939 = vadd.f32 0.0, %v938
        %v940 = vpop.f32.mrf.mxu0
        %941 = vdwg.mxu0
        %v942 = vmul.f32 %v939, 0.17677669
        %vm943 = vcmask 130048
        %v944 = vsel %vm943, %v942, -inf
        %v945 = vrot.slane %v944, 4
        %v946 = vmax.f32 %v944, %v945
        %v947 = vrot.slane %v946, 2
        %v948 = vmax.f32 %v946, %v947
        %v949 = vrot.slane %v948, 1
        %v950 = vmax.f32 %v948, %v949
        %v951 = vsub.f32 %v942, %v950
        %v952 = vmul.f32 %v951, 1.442695
        %v953 = vpow.pop %v952
        %v954 = vsel %vm943, %v953, 0.0
        %v955 = vrot.slane %v954, 4
        %v956 = vadd.f32 %v954, %v955
        %v957 = vrot.slane %v956, 2
        %v958 = vadd.f32 %v956, %v957
        %v959 = vrot.slane %v958, 1
        %v960 = vadd.f32 %v958, %v959
        %v961 = vrcp.pop %v960
        %v962 = vmul.f32 %v953, %v961
        %v964 = vsel %vm943, %v962, 0
        %966 = vmatprep.subr.mxu0 0.0
        %967 = vmatpush1.msra.mxu0 0.0
        %968 = vmatprep.subr.mxu0 0.0
        %969 = vmatpush1.msra.mxu0 0.0
        %970 = vmatprep.subr.mxu0 0.0
        %971 = vmatpush1.msra.mxu0 0.0
        %972 = vmatprep.subr.mxu0 0.0
        %973 = vmatpush1.msra.mxu0 0.0
        %974 = vmatprep.subr.mxu0 0.0
        %975 = vmatpush1.msra.mxu0 0.0
        %976 = vmatprep.subr.mxu0 0.0
        %977 = vmatpush1.msra.mxu0 0.0
        %978 = vmatprep.subr.mxu0 0.0
        %979 = vmatpush1.msra.mxu0 0.0
        %980 = vmatprep.subr.mxu0 0.0
        %981 = vmatpush1.msra.mxu0 0.0
        %982 = vmatprep.subr.mxu0 0.0
        %983 = vmatpush1.msra.mxu0 0.0
        %984 = vmatprep.subr.mxu0 0.0
        %985 = vmatpush1.msra.mxu0 0.0
        %986 = vmatprep.subr.mxu0 0.0
        %987 = vmatpush1.msra.mxu0 0.0
        %988 = vmatprep.subr.mxu0 0.0
        %989 = vmatpush1.msra.mxu0 0.0
        %990 = vmatprep.subr.mxu0 0.0
        %991 = vmatpush1.msra.mxu0 0.0
        %992 = vmatprep.subr.mxu0 0.0
        %993 = vmatpush1.msra.mxu0 0.0
        %994 = vmatprep.subr.mxu0 0.0
        %995 = vmatpush1.msra.mxu0 %v687
        %996 = vmatprep.subr.mxu0 0.0
        %997 = vmatpush1.msra.mxu0 %v860
        %998 = vmatprep.subr.mxu0 0.0
        %999 = vmatpush2.msra.mxu0 0.0
        %1000 = vmatprep.subr.mxu0 0.0
        %1001 = vmatpush2.msra.mxu0 0.0
        %1002 = vmatprep.subr.mxu0 0.0
        %1003 = vmatpush2.msra.mxu0 0.0
        %1004 = vmatprep.subr.mxu0 0.0
        %1005 = vmatpush2.msra.mxu0 0.0
        %1006 = vmatprep.subr.mxu0 0.0
        %1007 = vmatpush2.msra.mxu0 0.0
        %1008 = vmatprep.subr.mxu0 0.0
        %1009 = vmatpush2.msra.mxu0 0.0
        %1010 = vmatprep.subr.mxu0 0.0
        %1011 = vmatpush2.msra.mxu0 0.0
        %1012 = vmatprep.subr.mxu0 0.0
        %1013 = vmatpush2.msra.mxu0 0.0
        %1014 = vmatprep.subr.mxu0 0.0
        %1015 = vmatpush2.msra.mxu0 0.0
        %1016 = vmatprep.subr.mxu0 0.0
        %1017 = vmatpush2.msra.mxu0 0.0
        %1018 = vmatprep.subr.mxu0 0.0
        %1019 = vmatpush2.msra.mxu0 0.0
        %1020 = vmatprep.subr.mxu0 0.0
        %1021 = vmatpush2.msra.mxu0 0.0
        %1022 = vmatprep.subr.mxu0 0.0
        %1023 = vmatpush2.msra.mxu0 0.0
        %1024 = vmatprep.subr.mxu0 0.0
        %1025 = vmatpush2.msra.mxu0 0.0
        %1026 = vmatprep.subr.mxu0 0.0
        %1027 = vmatpush2.msra.mxu0 0.0
        %1028 = vmatprep.subr.mxu0 0.0
        %1029 = vmatpush2.msra.mxu0 0.0
        %1030 = vmatprep.mubr.f32.mxu0 0.0
        %1031 = vmatmul.mubr.f32.gmra.mxu0 %v964
        %v1032 = vpop.f32.mrf.mxu0
        %v1033 = vadd.f32 0.0, %v1032
        %v1034 = vpop.f32.mrf.mxu0
        %1035 = vdwg.mxu0
        %s1036 = scalar_lea.vmem [#allocation7], 32
        %v1037 = vld [vmem:[%s1036] sm:$0xff]
        %v1038 = vld [vmem:[%s1036 + $0x8] sm:$0xff]
        %v1039 = vld [vmem:[%s1036 + $0x10] sm:$0xff]
        %v1040 = vld [vmem:[%s1036 + $0x18] sm:$0xff]
        %s1041 = scalar_lea.vmem %s3, 1
        %v1042 = vld [vmem:[%s1041] sm:$0x1]
        %s1043 = scalar_lea.vmem [#allocation8], 32
        %v1044 = vld [vmem:[%s1043] sm:$0xff]
        %v1045 = vld [vmem:[%s1043 + $0x8] sm:$0xff]
        %v1046 = vld [vmem:[%s1043 + $0x10] sm:$0xff]
        %v1047 = vld [vmem:[%s1043 + $0x18] sm:$0xff]
        %s1048 = scalar_lea.vmem %s5, 1
        %v1049 = vld [vmem:[%s1048] sm:$0x1]
        %s1050 = scalar_lea.vmem [#allocation10], 32
        %v1051 = vld [vmem:[%s1050] sm:$0xff]
        %v1052 = vld [vmem:[%s1050 + $0x8] sm:$0xff]
        %v1053 = vld [vmem:[%s1050 + $0x10] sm:$0xff]
        %v1054 = vld [vmem:[%s1050 + $0x18] sm:$0xff]
        %s1055 = scalar_lea.vmem %s7, 1
        %v1056 = vld [vmem:[%s1055] sm:$0x1]
        %s1057 = scalar_lea.vmem [#allocation11], 32
        %v1058 = vld [vmem:[%s1057] sm:$0xff]
        %v1059 = vld [vmem:[%s1057 + $0x8] sm:$0xff]
        %v1060 = vld [vmem:[%s1057 + $0x10] sm:$0xff]
        %v1061 = vld [vmem:[%s1057 + $0x18] sm:$0xff]
        %s1062 = scalar_lea.vmem %s9, 1
        %v1063 = vld [vmem:[%s1062] sm:$0x1]
        %v1065 = vlaneseq
        %v1066 = vshrl.u32 %v1065, 7
        %v1067 = vsub.s32 0, %v1066
        %v1068 = vrot.slane %v1042, %v1067
        %v1071 = vsel %vm536, %v1033, 0
        %1073 = vmatprep.subr.mxu0 0.0
        %1074 = vmatpush1.msra.mxu0 0.0
        %1075 = vmatprep.subr.mxu0 0.0
        %1076 = vmatpush1.msra.mxu0 0.0
        %1077 = vmatprep.subr.mxu0 0.0
        %1078 = vmatpush1.msra.mxu0 0.0
        %1079 = vmatprep.subr.mxu0 0.0
        %1080 = vmatpush1.msra.mxu0 0.0
        %1081 = vmatprep.subr.mxu0 0.0
        %1082 = vmatpush1.msra.mxu0 0.0
        %1083 = vmatprep.subr.mxu0 0.0
        %1084 = vmatpush1.msra.mxu0 0.0
        %1085 = vmatprep.subr.mxu0 0.0
        %1086 = vmatpush1.msra.mxu0 0.0
        %1087 = vmatprep.subr.mxu0 0.0
        %1088 = vmatpush1.msra.mxu0 0.0
        %1089 = vmatprep.subr.mxu0 0.0
        %1090 = vmatpush1.msra.mxu0 0.0
        %1091 = vmatprep.subr.mxu0 0.0
        %1092 = vmatpush1.msra.mxu0 0.0
        %1093 = vmatprep.subr.mxu0 0.0
        %1094 = vmatpush1.msra.mxu0 0.0
        %1095 = vmatprep.subr.mxu0 0.0
        %1096 = vmatpush1.msra.mxu0 0.0
        %1097 = vmatprep.subr.mxu0 0.0
        %1098 = vmatpush1.msra.mxu0 %v1040
        %1099 = vmatprep.subr.mxu0 0.0
        %1100 = vmatpush1.msra.mxu0 %v1039
        %1101 = vmatprep.subr.mxu0 0.0
        %1102 = vmatpush1.msra.mxu0 %v1038
        %1103 = vmatprep.subr.mxu0 0.0
        %1104 = vmatpush1.msra.mxu0 %v1037
        %1105 = vmatprep.subr.mxu0 0.0
        %1106 = vmatpush2.msra.mxu0 0.0
        %1107 = vmatprep.subr.mxu0 0.0
        %1108 = vmatpush2.msra.mxu0 0.0
        %1109 = vmatprep.subr.mxu0 0.0
        %1110 = vmatpush2.msra.mxu0 0.0
        %1111 = vmatprep.subr.mxu0 0.0
        %1112 = vmatpush2.msra.mxu0 0.0
        %1113 = vmatprep.subr.mxu0 0.0
        %1114 = vmatpush2.msra.mxu0 0.0
        %1115 = vmatprep.subr.mxu0 0.0
        %1116 = vmatpush2.msra.mxu0 0.0
        %1117 = vmatprep.subr.mxu0 0.0
        %1118 = vmatpush2.msra.mxu0 0.0
        %1119 = vmatprep.subr.mxu0 0.0
        %1120 = vmatpush2.msra.mxu0 0.0
        %1121 = vmatprep.subr.mxu0 0.0
        %1122 = vmatpush2.msra.mxu0 0.0
        %1123 = vmatprep.subr.mxu0 0.0
        %1124 = vmatpush2.msra.mxu0 0.0
        %1125 = vmatprep.subr.mxu0 0.0
        %1126 = vmatpush2.msra.mxu0 0.0
        %1127 = vmatprep.subr.mxu0 0.0
        %1128 = vmatpush2.msra.mxu0 0.0
        %1129 = vmatprep.subr.mxu0 0.0
        %1130 = vmatpush2.msra.mxu0 0.0
        %1131 = vmatprep.subr.mxu0 0.0
        %1132 = vmatpush2.msra.mxu0 0.0
        %1133 = vmatprep.subr.mxu0 0.0
        %1134 = vmatpush2.msra.mxu0 0.0
        %1135 = vmatprep.subr.mxu0 0.0
        %1136 = vmatpush2.msra.mxu0 0.0
        %1137 = vmatprep.mubr.f32.mxu0 0.0
        %1138 = vmatmul.mubr.f32.gmra.mxu0 %v1071
        %v1139 = vpop.f32.mrf.mxu0
        %v1140 = vadd.f32 %v1068, %v1139
        %v1141 = vpop.f32.mrf.mxu0
        %1142 = vdwg.mxu0
        %v1143 = vmax.f32 %v1140, 0.0
        %v1145 = vlaneseq
        %v1146 = vshrl.u32 %v1145, 7
        %v1147 = vsub.s32 0, %v1146
        %v1148 = vrot.slane %v1049, %v1147
        %v1151 = vsel %vm536, %v1143, 0
        %1153 = vmatprep.subr.mxu0 0.0
        %1154 = vmatpush1.msra.mxu0 0.0
        %1155 = vmatprep.subr.mxu0 0.0
        %1156 = vmatpush1.msra.mxu0 0.0
        %1157 = vmatprep.subr.mxu0 0.0
        %1158 = vmatpush1.msra.mxu0 0.0
        %1159 = vmatprep.subr.mxu0 0.0
        %1160 = vmatpush1.msra.mxu0 0.0
        %1161 = vmatprep.subr.mxu0 0.0
        %1162 = vmatpush1.msra.mxu0 0.0
        %1163 = vmatprep.subr.mxu0 0.0
        %1164 = vmatpush1.msra.mxu0 0.0
        %1165 = vmatprep.subr.mxu0 0.0
        %1166 = vmatpush1.msra.mxu0 0.0
        %1167 = vmatprep.subr.mxu0 0.0
        %1168 = vmatpush1.msra.mxu0 0.0
        %1169 = vmatprep.subr.mxu0 0.0
        %1170 = vmatpush1.msra.mxu0 0.0
        %1171 = vmatprep.subr.mxu0 0.0
        %1172 = vmatpush1.msra.mxu0 0.0
        %1173 = vmatprep.subr.mxu0 0.0
        %1174 = vmatpush1.msra.mxu0 0.0
        %1175 = vmatprep.subr.mxu0 0.0
        %1176 = vmatpush1.msra.mxu0 0.0
        %1177 = vmatprep.subr.mxu0 0.0
        %1178 = vmatpush1.msra.mxu0 %v1047
        %1179 = vmatprep.subr.mxu0 0.0
        %1180 = vmatpush1.msra.mxu0 %v1046
        %1181 = vmatprep.subr.mxu0 0.0
        %1182 = vmatpush1.msra.mxu0 %v1045
        %1183 = vmatprep.subr.mxu0 0.0
        %1184 = vmatpush1.msra.mxu0 %v1044
        %1185 = vmatprep.subr.mxu0 0.0
        %1186 = vmatpush2.msra.mxu0 0.0
        %1187 = vmatprep.subr.mxu0 0.0
        %1188 = vmatpush2.msra.mxu0 0.0
        %1189 = vmatprep.subr.mxu0 0.0
        %1190 = vmatpush2.msra.mxu0 0.0
        %1191 = vmatprep.subr.mxu0 0.0
        %1192 = vmatpush2.msra.mxu0 0.0
        %1193 = vmatprep.subr.mxu0 0.0
        %1194 = vmatpush2.msra.mxu0 0.0
        %1195 = vmatprep.subr.mxu0 0.0
        %1196 = vmatpush2.msra.mxu0 0.0
        %1197 = vmatprep.subr.mxu0 0.0
        %1198 = vmatpush2.msra.mxu0 0.0
        %1199 = vmatprep.subr.mxu0 0.0
        %1200 = vmatpush2.msra.mxu0 0.0
        %1201 = vmatprep.subr.mxu0 0.0
        %1202 = vmatpush2.msra.mxu0 0.0
        %1203 = vmatprep.subr.mxu0 0.0
        %1204 = vmatpush2.msra.mxu0 0.0
        %1205 = vmatprep.subr.mxu0 0.0
        %1206 = vmatpush2.msra.mxu0 0.0
        %1207 = vmatprep.subr.mxu0 0.0
        %1208 = vmatpush2.msra.mxu0 0.0
        %1209 = vmatprep.subr.mxu0 0.0
        %1210 = vmatpush2.msra.mxu0 0.0
        %1211 = vmatprep.subr.mxu0 0.0
        %1212 = vmatpush2.msra.mxu0 0.0
        %1213 = vmatprep.subr.mxu0 0.0
        %1214 = vmatpush2.msra.mxu0 0.0
        %1215 = vmatprep.subr.mxu0 0.0
        %1216 = vmatpush2.msra.mxu0 0.0
        %1217 = vmatprep.mubr.f32.mxu0 0.0
        %1218 = vmatmul.mubr.f32.gmra.mxu0 %v1151
        %v1219 = vpop.f32.mrf.mxu0
        %v1220 = vadd.f32 %v1148, %v1219
        %v1221 = vpop.f32.mrf.mxu0
        %1222 = vdwg.mxu0
        %v1224 = vlaneseq
        %v1225 = vshrl.u32 %v1224, 7
        %v1226 = vsub.s32 0, %v1225
        %v1227 = vrot.slane %v1056, %v1226
        %1229 = vmatprep.subr.mxu0 0.0
        %1230 = vmatpush1.msra.mxu0 0.0
        %1231 = vmatprep.subr.mxu0 0.0
        %1232 = vmatpush1.msra.mxu0 0.0
        %1233 = vmatprep.subr.mxu0 0.0
        %1234 = vmatpush1.msra.mxu0 0.0
        %1235 = vmatprep.subr.mxu0 0.0
        %1236 = vmatpush1.msra.mxu0 0.0
        %1237 = vmatprep.subr.mxu0 0.0
        %1238 = vmatpush1.msra.mxu0 0.0
        %1239 = vmatprep.subr.mxu0 0.0
        %1240 = vmatpush1.msra.mxu0 0.0
        %1241 = vmatprep.subr.mxu0 0.0
        %1242 = vmatpush1.msra.mxu0 0.0
        %1243 = vmatprep.subr.mxu0 0.0
        %1244 = vmatpush1.msra.mxu0 0.0
        %1245 = vmatprep.subr.mxu0 0.0
        %1246 = vmatpush1.msra.mxu0 0.0
        %1247 = vmatprep.subr.mxu0 0.0
        %1248 = vmatpush1.msra.mxu0 0.0
        %1249 = vmatprep.subr.mxu0 0.0
        %1250 = vmatpush1.msra.mxu0 0.0
        %1251 = vmatprep.subr.mxu0 0.0
        %1252 = vmatpush1.msra.mxu0 0.0
        %1253 = vmatprep.subr.mxu0 0.0
        %1254 = vmatpush1.msra.mxu0 %v1054
        %1255 = vmatprep.subr.mxu0 0.0
        %1256 = vmatpush1.msra.mxu0 %v1053
        %1257 = vmatprep.subr.mxu0 0.0
        %1258 = vmatpush1.msra.mxu0 %v1052
        %1259 = vmatprep.subr.mxu0 0.0
        %1260 = vmatpush1.msra.mxu0 %v1051
        %1261 = vmatprep.subr.mxu0 0.0
        %1262 = vmatpush2.msra.mxu0 0.0
        %1263 = vmatprep.subr.mxu0 0.0
        %1264 = vmatpush2.msra.mxu0 0.0
        %1265 = vmatprep.subr.mxu0 0.0
        %1266 = vmatpush2.msra.mxu0 0.0
        %1267 = vmatprep.subr.mxu0 0.0
        %1268 = vmatpush2.msra.mxu0 0.0
        %1269 = vmatprep.subr.mxu0 0.0
        %1270 = vmatpush2.msra.mxu0 0.0
        %1271 = vmatprep.subr.mxu0 0.0
        %1272 = vmatpush2.msra.mxu0 0.0
        %1273 = vmatprep.subr.mxu0 0.0
        %1274 = vmatpush2.msra.mxu0 0.0
        %1275 = vmatprep.subr.mxu0 0.0
        %1276 = vmatpush2.msra.mxu0 0.0
        %1277 = vmatprep.subr.mxu0 0.0
        %1278 = vmatpush2.msra.mxu0 0.0
        %1279 = vmatprep.subr.mxu0 0.0
        %1280 = vmatpush2.msra.mxu0 0.0
        %1281 = vmatprep.subr.mxu0 0.0
        %1282 = vmatpush2.msra.mxu0 0.0
        %1283 = vmatprep.subr.mxu0 0.0
        %1284 = vmatpush2.msra.mxu0 0.0
        %1285 = vmatprep.subr.mxu0 0.0
        %1286 = vmatpush2.msra.mxu0 0.0
        %1287 = vmatprep.subr.mxu0 0.0
        %1288 = vmatpush2.msra.mxu0 0.0
        %1289 = vmatprep.subr.mxu0 0.0
        %1290 = vmatpush2.msra.mxu0 0.0
        %1291 = vmatprep.subr.mxu0 0.0
        %1292 = vmatpush2.msra.mxu0 0.0
        %1293 = vmatprep.mubr.f32.mxu0 0.0
        %1294 = vmatmul.mubr.f32.gmra.mxu0 %v1071
        %v1295 = vpop.f32.mrf.mxu0
        %v1296 = vadd.f32 %v1227, %v1295
        %v1297 = vpop.f32.mrf.mxu0
        %1298 = vmatprep.mubr.f32.mxu0 0.0
        %1299 = vmatmul.mubr.f32.gmra.mxu0 %v697
        %v1300 = vpop.f32.mrf.mxu0
        %v1301 = vadd.f32 %v1227, %v1300
        %v1302 = vpop.f32.mrf.mxu0
        %1303 = vdwg.mxu0
        %v1304 = vmax.f32 %v1296, 0.0
        %v1305 = vmax.f32 %v1301, 0.0
        %v1307 = vlaneseq
        %v1308 = vshrl.u32 %v1307, 7
        %v1309 = vsub.s32 0, %v1308
        %v1310 = vrot.slane %v1063, %v1309
        %v1313 = vsel %vm536, %v1304, 0
        %v1316 = vsel %vm536, %v1305, 0
        %1318 = vmatprep.subr.mxu0 0.0
        %1319 = vmatpush1.msra.mxu0 0.0
        %1320 = vmatprep.subr.mxu0 0.0
        %1321 = vmatpush1.msra.mxu0 0.0
        %1322 = vmatprep.subr.mxu0 0.0
        %1323 = vmatpush1.msra.mxu0 0.0
        %1324 = vmatprep.subr.mxu0 0.0
        %1325 = vmatpush1.msra.mxu0 0.0
        %1326 = vmatprep.subr.mxu0 0.0
        %1327 = vmatpush1.msra.mxu0 0.0
        %1328 = vmatprep.subr.mxu0 0.0
        %1329 = vmatpush1.msra.mxu0 0.0
        %1330 = vmatprep.subr.mxu0 0.0
        %1331 = vmatpush1.msra.mxu0 0.0
        %1332 = vmatprep.subr.mxu0 0.0
        %1333 = vmatpush1.msra.mxu0 0.0
        %1334 = vmatprep.subr.mxu0 0.0
        %1335 = vmatpush1.msra.mxu0 0.0
        %1336 = vmatprep.subr.mxu0 0.0
        %1337 = vmatpush1.msra.mxu0 0.0
        %1338 = vmatprep.subr.mxu0 0.0
        %1339 = vmatpush1.msra.mxu0 0.0
        %1340 = vmatprep.subr.mxu0 0.0
        %1341 = vmatpush1.msra.mxu0 0.0
        %1342 = vmatprep.subr.mxu0 0.0
        %1343 = vmatpush1.msra.mxu0 %v1061
        %1344 = vmatprep.subr.mxu0 0.0
        %1345 = vmatpush1.msra.mxu0 %v1060
        %1346 = vmatprep.subr.mxu0 0.0
        %1347 = vmatpush1.msra.mxu0 %v1059
        %1348 = vmatprep.subr.mxu0 0.0
        %1349 = vmatpush1.msra.mxu0 %v1058
        %1350 = vmatprep.subr.mxu0 0.0
        %1351 = vmatpush2.msra.mxu0 0.0
        %1352 = vmatprep.subr.mxu0 0.0
        %1353 = vmatpush2.msra.mxu0 0.0
        %1354 = vmatprep.subr.mxu0 0.0
        %1355 = vmatpush2.msra.mxu0 0.0
        %1356 = vmatprep.subr.mxu0 0.0
        %1357 = vmatpush2.msra.mxu0 0.0
        %1358 = vmatprep.subr.mxu0 0.0
        %1359 = vmatpush2.msra.mxu0 0.0
        %1360 = vmatprep.subr.mxu0 0.0
        %1361 = vmatpush2.msra.mxu0 0.0
        %1362 = vmatprep.subr.mxu0 0.0
        %1363 = vmatpush2.msra.mxu0 0.0
        %1364 = vmatprep.subr.mxu0 0.0
        %1365 = vmatpush2.msra.mxu0 0.0
        %1366 = vmatprep.subr.mxu0 0.0
        %1367 = vmatpush2.msra.mxu0 0.0
        %1368 = vmatprep.subr.mxu0 0.0
        %1369 = vmatpush2.msra.mxu0 0.0
        %1370 = vmatprep.subr.mxu0 0.0
        %1371 = vmatpush2.msra.mxu0 0.0
        %1372 = vmatprep.subr.mxu0 0.0
        %1373 = vmatpush2.msra.mxu0 0.0
        %1374 = vmatprep.subr.mxu0 0.0
        %1375 = vmatpush2.msra.mxu0 0.0
        %1376 = vmatprep.subr.mxu0 0.0
        %1377 = vmatpush2.msra.mxu0 0.0
        %1378 = vmatprep.subr.mxu0 0.0
        %1379 = vmatpush2.msra.mxu0 0.0
        %1380 = vmatprep.subr.mxu0 0.0
        %1381 = vmatpush2.msra.mxu0 0.0
        %1382 = vmatprep.mubr.f32.mxu0 0.0
        %1383 = vmatmul.mubr.f32.gmra.mxu0 %v1313
        %v1384 = vpop.f32.mrf.mxu0
        %v1385 = vadd.f32 %v1310, %v1384
        %v1386 = vpop.f32.mrf.mxu0
        %1387 = vmatprep.mubr.f32.mxu0 0.0
        %1388 = vmatmul.mubr.f32.gmra.mxu0 %v1316
        %v1389 = vpop.f32.mrf.mxu0
        %v1390 = vadd.f32 %v1310, %v1389
        %v1391 = vpop.f32.mrf.mxu0
        %1392 = vdwg.mxu0
        %v1394 = vsel %vm536, %v1220, 0
        %v1397 = vsel %vm536, %v1390, 0
        %v1400 = vsel %vm536, %v1385, 0
        %1402 = vmatprep.subr.mxu0 0.0
        %1403 = vmatpush1.xpose.msra.mxu0 0.0
        %1404 = vmatprep.subr.mxu0 0.0
        %1405 = vmatpush1.xpose.msra.mxu0 0.0
        %1406 = vmatprep.subr.mxu0 0.0
        %1407 = vmatpush1.xpose.msra.mxu0 0.0
        %1408 = vmatprep.subr.mxu0 0.0
        %1409 = vmatpush1.xpose.msra.mxu0 0.0
        %1410 = vmatprep.subr.mxu0 0.0
        %1411 = vmatpush1.xpose.msra.mxu0 0.0
        %1412 = vmatprep.subr.mxu0 0.0
        %1413 = vmatpush1.xpose.msra.mxu0 0.0
        %1414 = vmatprep.subr.mxu0 0.0
        %1415 = vmatpush1.xpose.msra.mxu0 0.0
        %1416 = vmatprep.subr.mxu0 0.0
        %1417 = vmatpush1.xpose.msra.mxu0 0.0
        %1418 = vmatprep.subr.mxu0 0.0
        %1419 = vmatpush1.xpose.msra.mxu0 0.0
        %1420 = vmatprep.subr.mxu0 0.0
        %1421 = vmatpush1.xpose.msra.mxu0 0.0
        %1422 = vmatprep.subr.mxu0 0.0
        %1423 = vmatpush1.xpose.msra.mxu0 0.0
        %1424 = vmatprep.subr.mxu0 0.0
        %1425 = vmatpush1.xpose.msra.mxu0 0.0
        %1426 = vmatprep.subr.mxu0 0.0
        %1427 = vmatpush1.xpose.msra.mxu0 0.0
        %1428 = vmatprep.subr.mxu0 0.0
        %1429 = vmatpush1.xpose.msra.mxu0 0.0
        %1430 = vmatprep.subr.mxu0 0.0
        %1431 = vmatpush1.xpose.msra.mxu0 %v1400
        %1432 = vmatprep.subr.mxu0 0.0
        %1433 = vmatpush1.xpose.msra.mxu0 %v1397
        %1434 = vmatprep.subr.mxu0 0.0
        %1435 = vmatpush2.xpose.msra.mxu0 0.0
        %1436 = vmatprep.subr.mxu0 0.0
        %1437 = vmatpush2.xpose.msra.mxu0 0.0
        %1438 = vmatprep.subr.mxu0 0.0
        %1439 = vmatpush2.xpose.msra.mxu0 0.0
        %1440 = vmatprep.subr.mxu0 0.0
        %1441 = vmatpush2.xpose.msra.mxu0 0.0
        %1442 = vmatprep.subr.mxu0 0.0
        %1443 = vmatpush2.xpose.msra.mxu0 0.0
        %1444 = vmatprep.subr.mxu0 0.0
        %1445 = vmatpush2.xpose.msra.mxu0 0.0
        %1446 = vmatprep.subr.mxu0 0.0
        %1447 = vmatpush2.xpose.msra.mxu0 0.0
        %1448 = vmatprep.subr.mxu0 0.0
        %1449 = vmatpush2.xpose.msra.mxu0 0.0
        %1450 = vmatprep.subr.mxu0 0.0
        %1451 = vmatpush2.xpose.msra.mxu0 0.0
        %1452 = vmatprep.subr.mxu0 0.0
        %1453 = vmatpush2.xpose.msra.mxu0 0.0
        %1454 = vmatprep.subr.mxu0 0.0
        %1455 = vmatpush2.xpose.msra.mxu0 0.0
        %1456 = vmatprep.subr.mxu0 0.0
        %1457 = vmatpush2.xpose.msra.mxu0 0.0
        %1458 = vmatprep.subr.mxu0 0.0
        %1459 = vmatpush2.xpose.msra.mxu0 0.0
        %1460 = vmatprep.subr.mxu0 0.0
        %1461 = vmatpush2.xpose.msra.mxu0 0.0
        %1462 = vmatprep.subr.mxu0 0.0
        %1463 = vmatpush2.xpose.msra.mxu0 0.0
        %1464 = vmatprep.subr.mxu0 0.0
        %1465 = vmatpush2.xpose.msra.mxu0 0.0
        %1466 = vmatprep.mubr.f32.mxu0 0.0
        %1467 = vmatmul.mubr.f32.gmra.mxu0 %v1394
        %v1468 = vpop.f32.mrf.mxu0
        %v1469 = vadd.f32 0.0, %v1468
        %v1470 = vpop.f32.mrf.mxu0
        %1471 = vdwg.mxu0
        %v1472 = vmul.f32 %v1469, 0.17677669
        %v1473 = vsel %vm943, %v1472, -inf
        %v1474 = vrot.slane %v1473, 4
        %v1475 = vmax.f32 %v1473, %v1474
        %v1476 = vrot.slane %v1475, 2
        %v1477 = vmax.f32 %v1475, %v1476
        %v1478 = vrot.slane %v1477, 1
        %v1479 = vmax.f32 %v1477, %v1478
        %v1480 = vsub.f32 %v1472, %v1479
        %v1481 = vmul.f32 %v1480, 1.442695
        %v1482 = vpow.pop %v1481
        %v1483 = vsel %vm943, %v1482, 0.0
        %v1484 = vrot.slane %v1483, 4
        %v1485 = vadd.f32 %v1483, %v1484
        %v1486 = vrot.slane %v1485, 2
        %v1487 = vadd.f32 %v1485, %v1486
        %v1488 = vrot.slane %v1487, 1
        %v1489 = vadd.f32 %v1487, %v1488
        %v1490 = vrcp.pop %v1489
        %v1491 = vmul.f32 %v1482, %v1490
        %v1493 = vsel %vm943, %v1491, 0
        %1495 = vmatprep.subr.mxu0 0.0
        %1496 = vmatpush1.msra.mxu0 0.0
        %1497 = vmatprep.subr.mxu0 0.0
        %1498 = vmatpush1.msra.mxu0 0.0
        %1499 = vmatprep.subr.mxu0 0.0
        %1500 = vmatpush1.msra.mxu0 0.0
        %1501 = vmatprep.subr.mxu0 0.0
        %1502 = vmatpush1.msra.mxu0 0.0
        %1503 = vmatprep.subr.mxu0 0.0
        %1504 = vmatpush1.msra.mxu0 0.0
        %1505 = vmatprep.subr.mxu0 0.0
        %1506 = vmatpush1.msra.mxu0 0.0
        %1507 = vmatprep.subr.mxu0 0.0
        %1508 = vmatpush1.msra.mxu0 0.0
        %1509 = vmatprep.subr.mxu0 0.0
        %1510 = vmatpush1.msra.mxu0 0.0
        %1511 = vmatprep.subr.mxu0 0.0
        %1512 = vmatpush1.msra.mxu0 0.0
        %1513 = vmatprep.subr.mxu0 0.0
        %1514 = vmatpush1.msra.mxu0 0.0
        %1515 = vmatprep.subr.mxu0 0.0
        %1516 = vmatpush1.msra.mxu0 0.0
        %1517 = vmatprep.subr.mxu0 0.0
        %1518 = vmatpush1.msra.mxu0 0.0
        %1519 = vmatprep.subr.mxu0 0.0
        %1520 = vmatpush1.msra.mxu0 0.0
        %1521 = vmatprep.subr.mxu0 0.0
        %1522 = vmatpush1.msra.mxu0 0.0
        %1523 = vmatprep.subr.mxu0 0.0
        %1524 = vmatpush1.msra.mxu0 %v1220
        %1525 = vmatprep.subr.mxu0 0.0
        %1526 = vmatpush1.msra.mxu0 %v1390
        %1527 = vmatprep.subr.mxu0 0.0
        %1528 = vmatpush2.msra.mxu0 0.0
        %1529 = vmatprep.subr.mxu0 0.0
        %1530 = vmatpush2.msra.mxu0 0.0
        %1531 = vmatprep.subr.mxu0 0.0
        %1532 = vmatpush2.msra.mxu0 0.0
        %1533 = vmatprep.subr.mxu0 0.0
        %1534 = vmatpush2.msra.mxu0 0.0
        %1535 = vmatprep.subr.mxu0 0.0
        %1536 = vmatpush2.msra.mxu0 0.0
        %1537 = vmatprep.subr.mxu0 0.0
        %1538 = vmatpush2.msra.mxu0 0.0
        %1539 = vmatprep.subr.mxu0 0.0
        %1540 = vmatpush2.msra.mxu0 0.0
        %1541 = vmatprep.subr.mxu0 0.0
        %1542 = vmatpush2.msra.mxu0 0.0
        %1543 = vmatprep.subr.mxu0 0.0
        %1544 = vmatpush2.msra.mxu0 0.0
        %1545 = vmatprep.subr.mxu0 0.0
        %1546 = vmatpush2.msra.mxu0 0.0
        %1547 = vmatprep.subr.mxu0 0.0
        %1548 = vmatpush2.msra.mxu0 0.0
        %1549 = vmatprep.subr.mxu0 0.0
        %1550 = vmatpush2.msra.mxu0 0.0
        %1551 = vmatprep.subr.mxu0 0.0
        %1552 = vmatpush2.msra.mxu0 0.0
        %1553 = vmatprep.subr.mxu0 0.0
        %1554 = vmatpush2.msra.mxu0 0.0
        %1555 = vmatprep.subr.mxu0 0.0
        %1556 = vmatpush2.msra.mxu0 0.0
        %1557 = vmatprep.subr.mxu0 0.0
        %1558 = vmatpush2.msra.mxu0 0.0
        %1559 = vmatprep.mubr.f32.mxu0 0.0
        %1560 = vmatmul.mubr.f32.gmra.mxu0 %v1493
        %v1561 = vpop.f32.mrf.mxu0
        %v1562 = vadd.f32 0.0, %v1561
        %v1563 = vpop.f32.mrf.mxu0
        %1564 = vdwg.mxu0
        %s1565 = scalar_lea.vmem [#allocation7], 64
        %v1566 = vld [vmem:[%s1565] sm:$0xff]
        %v1567 = vld [vmem:[%s1565 + $0x8] sm:$0xff]
        %v1568 = vld [vmem:[%s1565 + $0x10] sm:$0xff]
        %v1569 = vld [vmem:[%s1565 + $0x18] sm:$0xff]
        %s1570 = scalar_lea.vmem %s3, 2
        %v1571 = vld [vmem:[%s1570] sm:$0x1]
        %s1572 = scalar_lea.vmem [#allocation8], 64
        %v1573 = vld [vmem:[%s1572] sm:$0xff]
        %v1574 = vld [vmem:[%s1572 + $0x8] sm:$0xff]
        %v1575 = vld [vmem:[%s1572 + $0x10] sm:$0xff]
        %v1576 = vld [vmem:[%s1572 + $0x18] sm:$0xff]
        %s1577 = scalar_lea.vmem %s5, 2
        %v1578 = vld [vmem:[%s1577] sm:$0x1]
        %s1579 = scalar_lea.vmem [#allocation10], 64
        %v1580 = vld [vmem:[%s1579] sm:$0xff]
        %v1581 = vld [vmem:[%s1579 + $0x8] sm:$0xff]
        %v1582 = vld [vmem:[%s1579 + $0x10] sm:$0xff]
        %v1583 = vld [vmem:[%s1579 + $0x18] sm:$0xff]
        %s1584 = scalar_lea.vmem %s7, 2
        %v1585 = vld [vmem:[%s1584] sm:$0x1]
        %s1586 = scalar_lea.vmem [#allocation11], 64
        %v1587 = vld [vmem:[%s1586] sm:$0xff]
        %v1588 = vld [vmem:[%s1586 + $0x8] sm:$0xff]
        %v1589 = vld [vmem:[%s1586 + $0x10] sm:$0xff]
        %v1590 = vld [vmem:[%s1586 + $0x18] sm:$0xff]
        %s1591 = scalar_lea.vmem %s9, 2
        %v1592 = vld [vmem:[%s1591] sm:$0x1]
        %v1594 = vlaneseq
        %v1595 = vshrl.u32 %v1594, 7
        %v1596 = vsub.s32 0, %v1595
        %v1597 = vrot.slane %v1571, %v1596
        %v1600 = vsel %vm536, %v1562, 0
        %1602 = vmatprep.subr.mxu0 0.0
        %1603 = vmatpush1.msra.mxu0 0.0
        %1604 = vmatprep.subr.mxu0 0.0
        %1605 = vmatpush1.msra.mxu0 0.0
        %1606 = vmatprep.subr.mxu0 0.0
        %1607 = vmatpush1.msra.mxu0 0.0
        %1608 = vmatprep.subr.mxu0 0.0
        %1609 = vmatpush1.msra.mxu0 0.0
        %1610 = vmatprep.subr.mxu0 0.0
        %1611 = vmatpush1.msra.mxu0 0.0
        %1612 = vmatprep.subr.mxu0 0.0
        %1613 = vmatpush1.msra.mxu0 0.0
        %1614 = vmatprep.subr.mxu0 0.0
        %1615 = vmatpush1.msra.mxu0 0.0
        %1616 = vmatprep.subr.mxu0 0.0
        %1617 = vmatpush1.msra.mxu0 0.0
        %1618 = vmatprep.subr.mxu0 0.0
        %1619 = vmatpush1.msra.mxu0 0.0
        %1620 = vmatprep.subr.mxu0 0.0
        %1621 = vmatpush1.msra.mxu0 0.0
        %1622 = vmatprep.subr.mxu0 0.0
        %1623 = vmatpush1.msra.mxu0 0.0
        %1624 = vmatprep.subr.mxu0 0.0
        %1625 = vmatpush1.msra.mxu0 0.0
        %1626 = vmatprep.subr.mxu0 0.0
        %1627 = vmatpush1.msra.mxu0 %v1569
        %1628 = vmatprep.subr.mxu0 0.0
        %1629 = vmatpush1.msra.mxu0 %v1568
        %1630 = vmatprep.subr.mxu0 0.0
        %1631 = vmatpush1.msra.mxu0 %v1567
        %1632 = vmatprep.subr.mxu0 0.0
        %1633 = vmatpush1.msra.mxu0 %v1566
        %1634 = vmatprep.subr.mxu0 0.0
        %1635 = vmatpush2.msra.mxu0 0.0
        %1636 = vmatprep.subr.mxu0 0.0
        %1637 = vmatpush2.msra.mxu0 0.0
        %1638 = vmatprep.subr.mxu0 0.0
        %1639 = vmatpush2.msra.mxu0 0.0
        %1640 = vmatprep.subr.mxu0 0.0
        %1641 = vmatpush2.msra.mxu0 0.0
        %1642 = vmatprep.subr.mxu0 0.0
        %1643 = vmatpush2.msra.mxu0 0.0
        %1644 = vmatprep.subr.mxu0 0.0
        %1645 = vmatpush2.msra.mxu0 0.0
        %1646 = vmatprep.subr.mxu0 0.0
        %1647 = vmatpush2.msra.mxu0 0.0
        %1648 = vmatprep.subr.mxu0 0.0
        %1649 = vmatpush2.msra.mxu0 0.0
        %1650 = vmatprep.subr.mxu0 0.0
        %1651 = vmatpush2.msra.mxu0 0.0
        %1652 = vmatprep.subr.mxu0 0.0
        %1653 = vmatpush2.msra.mxu0 0.0
        %1654 = vmatprep.subr.mxu0 0.0
        %1655 = vmatpush2.msra.mxu0 0.0
        %1656 = vmatprep.subr.mxu0 0.0
        %1657 = vmatpush2.msra.mxu0 0.0
        %1658 = vmatprep.subr.mxu0 0.0
        %1659 = vmatpush2.msra.mxu0 0.0
        %1660 = vmatprep.subr.mxu0 0.0
        %1661 = vmatpush2.msra.mxu0 0.0
        %1662 = vmatprep.subr.mxu0 0.0
        %1663 = vmatpush2.msra.mxu0 0.0
        %1664 = vmatprep.subr.mxu0 0.0
        %1665 = vmatpush2.msra.mxu0 0.0
        %1666 = vmatprep.mubr.f32.mxu0 0.0
        %1667 = vmatmul.mubr.f32.gmra.mxu0 %v1600
        %v1668 = vpop.f32.mrf.mxu0
        %v1669 = vadd.f32 %v1597, %v1668
        %v1670 = vpop.f32.mrf.mxu0
        %1671 = vdwg.mxu0
        %v1672 = vmax.f32 %v1669, 0.0
        %v1674 = vlaneseq
        %v1675 = vshrl.u32 %v1674, 7
        %v1676 = vsub.s32 0, %v1675
        %v1677 = vrot.slane %v1578, %v1676
        %v1680 = vsel %vm536, %v1672, 0
        %1682 = vmatprep.subr.mxu0 0.0
        %1683 = vmatpush1.msra.mxu0 0.0
        %1684 = vmatprep.subr.mxu0 0.0
        %1685 = vmatpush1.msra.mxu0 0.0
        %1686 = vmatprep.subr.mxu0 0.0
        %1687 = vmatpush1.msra.mxu0 0.0
        %1688 = vmatprep.subr.mxu0 0.0
        %1689 = vmatpush1.msra.mxu0 0.0
        %1690 = vmatprep.subr.mxu0 0.0
        %1691 = vmatpush1.msra.mxu0 0.0
        %1692 = vmatprep.subr.mxu0 0.0
        %1693 = vmatpush1.msra.mxu0 0.0
        %1694 = vmatprep.subr.mxu0 0.0
        %1695 = vmatpush1.msra.mxu0 0.0
        %1696 = vmatprep.subr.mxu0 0.0
        %1697 = vmatpush1.msra.mxu0 0.0
        %1698 = vmatprep.subr.mxu0 0.0
        %1699 = vmatpush1.msra.mxu0 0.0
        %1700 = vmatprep.subr.mxu0 0.0
        %1701 = vmatpush1.msra.mxu0 0.0
        %1702 = vmatprep.subr.mxu0 0.0
        %1703 = vmatpush1.msra.mxu0 0.0
        %1704 = vmatprep.subr.mxu0 0.0
        %1705 = vmatpush1.msra.mxu0 0.0
        %1706 = vmatprep.subr.mxu0 0.0
        %1707 = vmatpush1.msra.mxu0 %v1576
        %1708 = vmatprep.subr.mxu0 0.0
        %1709 = vmatpush1.msra.mxu0 %v1575
        %1710 = vmatprep.subr.mxu0 0.0
        %1711 = vmatpush1.msra.mxu0 %v1574
        %1712 = vmatprep.subr.mxu0 0.0
        %1713 = vmatpush1.msra.mxu0 %v1573
        %1714 = vmatprep.subr.mxu0 0.0
        %1715 = vmatpush2.msra.mxu0 0.0
        %1716 = vmatprep.subr.mxu0 0.0
        %1717 = vmatpush2.msra.mxu0 0.0
        %1718 = vmatprep.subr.mxu0 0.0
        %1719 = vmatpush2.msra.mxu0 0.0
        %1720 = vmatprep.subr.mxu0 0.0
        %1721 = vmatpush2.msra.mxu0 0.0
        %1722 = vmatprep.subr.mxu0 0.0
        %1723 = vmatpush2.msra.mxu0 0.0
        %1724 = vmatprep.subr.mxu0 0.0
        %1725 = vmatpush2.msra.mxu0 0.0
        %1726 = vmatprep.subr.mxu0 0.0
        %1727 = vmatpush2.msra.mxu0 0.0
        %1728 = vmatprep.subr.mxu0 0.0
        %1729 = vmatpush2.msra.mxu0 0.0
        %1730 = vmatprep.subr.mxu0 0.0
        %1731 = vmatpush2.msra.mxu0 0.0
        %1732 = vmatprep.subr.mxu0 0.0
        %1733 = vmatpush2.msra.mxu0 0.0
        %1734 = vmatprep.subr.mxu0 0.0
        %1735 = vmatpush2.msra.mxu0 0.0
        %1736 = vmatprep.subr.mxu0 0.0
        %1737 = vmatpush2.msra.mxu0 0.0
        %1738 = vmatprep.subr.mxu0 0.0
        %1739 = vmatpush2.msra.mxu0 0.0
        %1740 = vmatprep.subr.mxu0 0.0
        %1741 = vmatpush2.msra.mxu0 0.0
        %1742 = vmatprep.subr.mxu0 0.0
        %1743 = vmatpush2.msra.mxu0 0.0
        %1744 = vmatprep.subr.mxu0 0.0
        %1745 = vmatpush2.msra.mxu0 0.0
        %1746 = vmatprep.mubr.f32.mxu0 0.0
        %1747 = vmatmul.mubr.f32.gmra.mxu0 %v1680
        %v1748 = vpop.f32.mrf.mxu0
        %v1749 = vadd.f32 %v1677, %v1748
        %v1750 = vpop.f32.mrf.mxu0
        %1751 = vdwg.mxu0
        %v1753 = vlaneseq
        %v1754 = vshrl.u32 %v1753, 7
        %v1755 = vsub.s32 0, %v1754
        %v1756 = vrot.slane %v1585, %v1755
        %1758 = vmatprep.subr.mxu0 0.0
        %1759 = vmatpush1.msra.mxu0 0.0
        %1760 = vmatprep.subr.mxu0 0.0
        %1761 = vmatpush1.msra.mxu0 0.0
        %1762 = vmatprep.subr.mxu0 0.0
        %1763 = vmatpush1.msra.mxu0 0.0
        %1764 = vmatprep.subr.mxu0 0.0
        %1765 = vmatpush1.msra.mxu0 0.0
        %1766 = vmatprep.subr.mxu0 0.0
        %1767 = vmatpush1.msra.mxu0 0.0
        %1768 = vmatprep.subr.mxu0 0.0
        %1769 = vmatpush1.msra.mxu0 0.0
        %1770 = vmatprep.subr.mxu0 0.0
        %1771 = vmatpush1.msra.mxu0 0.0
        %1772 = vmatprep.subr.mxu0 0.0
        %1773 = vmatpush1.msra.mxu0 0.0
        %1774 = vmatprep.subr.mxu0 0.0
        %1775 = vmatpush1.msra.mxu0 0.0
        %1776 = vmatprep.subr.mxu0 0.0
        %1777 = vmatpush1.msra.mxu0 0.0
        %1778 = vmatprep.subr.mxu0 0.0
        %1779 = vmatpush1.msra.mxu0 0.0
        %1780 = vmatprep.subr.mxu0 0.0
        %1781 = vmatpush1.msra.mxu0 0.0
        %1782 = vmatprep.subr.mxu0 0.0
        %1783 = vmatpush1.msra.mxu0 %v1583
        %1784 = vmatprep.subr.mxu0 0.0
        %1785 = vmatpush1.msra.mxu0 %v1582
        %1786 = vmatprep.subr.mxu0 0.0
        %1787 = vmatpush1.msra.mxu0 %v1581
        %1788 = vmatprep.subr.mxu0 0.0
        %1789 = vmatpush1.msra.mxu0 %v1580
        %1790 = vmatprep.subr.mxu0 0.0
        %1791 = vmatpush2.msra.mxu0 0.0
        %1792 = vmatprep.subr.mxu0 0.0
        %1793 = vmatpush2.msra.mxu0 0.0
        %1794 = vmatprep.subr.mxu0 0.0
        %1795 = vmatpush2.msra.mxu0 0.0
        %1796 = vmatprep.subr.mxu0 0.0
        %1797 = vmatpush2.msra.mxu0 0.0
        %1798 = vmatprep.subr.mxu0 0.0
        %1799 = vmatpush2.msra.mxu0 0.0
        %1800 = vmatprep.subr.mxu0 0.0
        %1801 = vmatpush2.msra.mxu0 0.0
        %1802 = vmatprep.subr.mxu0 0.0
        %1803 = vmatpush2.msra.mxu0 0.0
        %1804 = vmatprep.subr.mxu0 0.0
        %1805 = vmatpush2.msra.mxu0 0.0
        %1806 = vmatprep.subr.mxu0 0.0
        %1807 = vmatpush2.msra.mxu0 0.0
        %1808 = vmatprep.subr.mxu0 0.0
        %1809 = vmatpush2.msra.mxu0 0.0
        %1810 = vmatprep.subr.mxu0 0.0
        %1811 = vmatpush2.msra.mxu0 0.0
        %1812 = vmatprep.subr.mxu0 0.0
        %1813 = vmatpush2.msra.mxu0 0.0
        %1814 = vmatprep.subr.mxu0 0.0
        %1815 = vmatpush2.msra.mxu0 0.0
        %1816 = vmatprep.subr.mxu0 0.0
        %1817 = vmatpush2.msra.mxu0 0.0
        %1818 = vmatprep.subr.mxu0 0.0
        %1819 = vmatpush2.msra.mxu0 0.0
        %1820 = vmatprep.subr.mxu0 0.0
        %1821 = vmatpush2.msra.mxu0 0.0
        %1822 = vmatprep.mubr.f32.mxu0 0.0
        %1823 = vmatmul.mubr.f32.gmra.mxu0 %v1600
        %v1824 = vpop.f32.mrf.mxu0
        %v1825 = vadd.f32 %v1756, %v1824
        %v1826 = vpop.f32.mrf.mxu0
        %1827 = vmatprep.mubr.f32.mxu0 0.0
        %1828 = vmatmul.mubr.f32.gmra.mxu0 %v697
        %v1829 = vpop.f32.mrf.mxu0
        %v1830 = vadd.f32 %v1756, %v1829
        %v1831 = vpop.f32.mrf.mxu0
        %1832 = vdwg.mxu0
        %v1833 = vmax.f32 %v1825, 0.0
        %v1834 = vmax.f32 %v1830, 0.0
        %v1836 = vlaneseq
        %v1837 = vshrl.u32 %v1836, 7
        %v1838 = vsub.s32 0, %v1837
        %v1839 = vrot.slane %v1592, %v1838
        %v1842 = vsel %vm536, %v1833, 0
        %v1845 = vsel %vm536, %v1834, 0
        %1847 = vmatprep.subr.mxu0 0.0
        %1848 = vmatpush1.msra.mxu0 0.0
        %1849 = vmatprep.subr.mxu0 0.0
        %1850 = vmatpush1.msra.mxu0 0.0
        %1851 = vmatprep.subr.mxu0 0.0
        %1852 = vmatpush1.msra.mxu0 0.0
        %1853 = vmatprep.subr.mxu0 0.0
        %1854 = vmatpush1.msra.mxu0 0.0
        %1855 = vmatprep.subr.mxu0 0.0
        %1856 = vmatpush1.msra.mxu0 0.0
        %1857 = vmatprep.subr.mxu0 0.0
        %1858 = vmatpush1.msra.mxu0 0.0
        %1859 = vmatprep.subr.mxu0 0.0
        %1860 = vmatpush1.msra.mxu0 0.0
        %1861 = vmatprep.subr.mxu0 0.0
        %1862 = vmatpush1.msra.mxu0 0.0
        %1863 = vmatprep.subr.mxu0 0.0
        %1864 = vmatpush1.msra.mxu0 0.0
        %1865 = vmatprep.subr.mxu0 0.0
        %1866 = vmatpush1.msra.mxu0 0.0
        %1867 = vmatprep.subr.mxu0 0.0
        %1868 = vmatpush1.msra.mxu0 0.0
        %1869 = vmatprep.subr.mxu0 0.0
        %1870 = vmatpush1.msra.mxu0 0.0
        %1871 = vmatprep.subr.mxu0 0.0
        %1872 = vmatpush1.msra.mxu0 %v1590
        %1873 = vmatprep.subr.mxu0 0.0
        %1874 = vmatpush1.msra.mxu0 %v1589
        %1875 = vmatprep.subr.mxu0 0.0
        %1876 = vmatpush1.msra.mxu0 %v1588
        %1877 = vmatprep.subr.mxu0 0.0
        %1878 = vmatpush1.msra.mxu0 %v1587
        %1879 = vmatprep.subr.mxu0 0.0
        %1880 = vmatpush2.msra.mxu0 0.0
        %1881 = vmatprep.subr.mxu0 0.0
        %1882 = vmatpush2.msra.mxu0 0.0
        %1883 = vmatprep.subr.mxu0 0.0
        %1884 = vmatpush2.msra.mxu0 0.0
        %1885 = vmatprep.subr.mxu0 0.0
        %1886 = vmatpush2.msra.mxu0 0.0
        %1887 = vmatprep.subr.mxu0 0.0
        %1888 = vmatpush2.msra.mxu0 0.0
        %1889 = vmatprep.subr.mxu0 0.0
        %1890 = vmatpush2.msra.mxu0 0.0
        %1891 = vmatprep.subr.mxu0 0.0
        %1892 = vmatpush2.msra.mxu0 0.0
        %1893 = vmatprep.subr.mxu0 0.0
        %1894 = vmatpush2.msra.mxu0 0.0
        %1895 = vmatprep.subr.mxu0 0.0
        %1896 = vmatpush2.msra.mxu0 0.0
        %1897 = vmatprep.subr.mxu0 0.0
        %1898 = vmatpush2.msra.mxu0 0.0
        %1899 = vmatprep.subr.mxu0 0.0
        %1900 = vmatpush2.msra.mxu0 0.0
        %1901 = vmatprep.subr.mxu0 0.0
        %1902 = vmatpush2.msra.mxu0 0.0
        %1903 = vmatprep.subr.mxu0 0.0
        %1904 = vmatpush2.msra.mxu0 0.0
        %1905 = vmatprep.subr.mxu0 0.0
        %1906 = vmatpush2.msra.mxu0 0.0
        %1907 = vmatprep.subr.mxu0 0.0
        %1908 = vmatpush2.msra.mxu0 0.0
        %1909 = vmatprep.subr.mxu0 0.0
        %1910 = vmatpush2.msra.mxu0 0.0
        %1911 = vmatprep.mubr.f32.mxu0 0.0
        %1912 = vmatmul.mubr.f32.gmra.mxu0 %v1842
        %v1913 = vpop.f32.mrf.mxu0
        %v1914 = vadd.f32 %v1839, %v1913
        %v1915 = vpop.f32.mrf.mxu0
        %1916 = vmatprep.mubr.f32.mxu0 0.0
        %1917 = vmatmul.mubr.f32.gmra.mxu0 %v1845
        %v1918 = vpop.f32.mrf.mxu0
        %v1919 = vadd.f32 %v1839, %v1918
        %v1920 = vpop.f32.mrf.mxu0
        %1921 = vdwg.mxu0
        %v1923 = vsel %vm536, %v1749, 0
        %v1926 = vsel %vm536, %v1919, 0
        %v1929 = vsel %vm536, %v1914, 0
        %1931 = vmatprep.subr.mxu0 0.0
        %1932 = vmatpush1.xpose.msra.mxu0 0.0
        %1933 = vmatprep.subr.mxu0 0.0
        %1934 = vmatpush1.xpose.msra.mxu0 0.0
        %1935 = vmatprep.subr.mxu0 0.0
        %1936 = vmatpush1.xpose.msra.mxu0 0.0
        %1937 = vmatprep.subr.mxu0 0.0
        %1938 = vmatpush1.xpose.msra.mxu0 0.0
        %1939 = vmatprep.subr.mxu0 0.0
        %1940 = vmatpush1.xpose.msra.mxu0 0.0
        %1941 = vmatprep.subr.mxu0 0.0
        %1942 = vmatpush1.xpose.msra.mxu0 0.0
        %1943 = vmatprep.subr.mxu0 0.0
        %1944 = vmatpush1.xpose.msra.mxu0 0.0
        %1945 = vmatprep.subr.mxu0 0.0
        %1946 = vmatpush1.xpose.msra.mxu0 0.0
        %1947 = vmatprep.subr.mxu0 0.0
        %1948 = vmatpush1.xpose.msra.mxu0 0.0
        %1949 = vmatprep.subr.mxu0 0.0
        %1950 = vmatpush1.xpose.msra.mxu0 0.0
        %1951 = vmatprep.subr.mxu0 0.0
        %1952 = vmatpush1.xpose.msra.mxu0 0.0
        %1953 = vmatprep.subr.mxu0 0.0
        %1954 = vmatpush1.xpose.msra.mxu0 0.0
        %1955 = vmatprep.subr.mxu0 0.0
        %1956 = vmatpush1.xpose.msra.mxu0 0.0
        %1957 = vmatprep.subr.mxu0 0.0
        %1958 = vmatpush1.xpose.msra.mxu0 0.0
        %1959 = vmatprep.subr.mxu0 0.0
        %1960 = vmatpush1.xpose.msra.mxu0 %v1929
        %1961 = vmatprep.subr.mxu0 0.0
        %1962 = vmatpush1.xpose.msra.mxu0 %v1926
        %1963 = vmatprep.subr.mxu0 0.0
        %1964 = vmatpush2.xpose.msra.mxu0 0.0
        %1965 = vmatprep.subr.mxu0 0.0
        %1966 = vmatpush2.xpose.msra.mxu0 0.0
        %1967 = vmatprep.subr.mxu0 0.0
        %1968 = vmatpush2.xpose.msra.mxu0 0.0
        %1969 = vmatprep.subr.mxu0 0.0
        %1970 = vmatpush2.xpose.msra.mxu0 0.0
        %1971 = vmatprep.subr.mxu0 0.0
        %1972 = vmatpush2.xpose.msra.mxu0 0.0
        %1973 = vmatprep.subr.mxu0 0.0
        %1974 = vmatpush2.xpose.msra.mxu0 0.0
        %1975 = vmatprep.subr.mxu0 0.0
        %1976 = vmatpush2.xpose.msra.mxu0 0.0
        %1977 = vmatprep.subr.mxu0 0.0
        %1978 = vmatpush2.xpose.msra.mxu0 0.0
        %1979 = vmatprep.subr.mxu0 0.0
        %1980 = vmatpush2.xpose.msra.mxu0 0.0
        %1981 = vmatprep.subr.mxu0 0.0
        %1982 = vmatpush2.xpose.msra.mxu0 0.0
        %1983 = vmatprep.subr.mxu0 0.0
        %1984 = vmatpush2.xpose.msra.mxu0 0.0
        %1985 = vmatprep.subr.mxu0 0.0
        %1986 = vmatpush2.xpose.msra.mxu0 0.0
        %1987 = vmatprep.subr.mxu0 0.0
        %1988 = vmatpush2.xpose.msra.mxu0 0.0
        %1989 = vmatprep.subr.mxu0 0.0
        %1990 = vmatpush2.xpose.msra.mxu0 0.0
        %1991 = vmatprep.subr.mxu0 0.0
        %1992 = vmatpush2.xpose.msra.mxu0 0.0
        %1993 = vmatprep.subr.mxu0 0.0
        %1994 = vmatpush2.xpose.msra.mxu0 0.0
        %1995 = vmatprep.mubr.f32.mxu0 0.0
        %1996 = vmatmul.mubr.f32.gmra.mxu0 %v1923
        %v1997 = vpop.f32.mrf.mxu0
        %v1998 = vadd.f32 0.0, %v1997
        %v1999 = vpop.f32.mrf.mxu0
        %2000 = vdwg.mxu0
        %v2001 = vmul.f32 %v1998, 0.17677669
        %v2002 = vsel %vm943, %v2001, -inf
        %v2003 = vrot.slane %v2002, 4
        %v2004 = vmax.f32 %v2002, %v2003
        %v2005 = vrot.slane %v2004, 2
        %v2006 = vmax.f32 %v2004, %v2005
        %v2007 = vrot.slane %v2006, 1
        %v2008 = vmax.f32 %v2006, %v2007
        %v2009 = vsub.f32 %v2001, %v2008
        %v2010 = vmul.f32 %v2009, 1.442695
        %v2011 = vpow.pop %v2010
        %v2012 = vsel %vm943, %v2011, 0.0
        %v2013 = vrot.slane %v2012, 4
        %v2014 = vadd.f32 %v2012, %v2013
        %v2015 = vrot.slane %v2014, 2
        %v2016 = vadd.f32 %v2014, %v2015
        %v2017 = vrot.slane %v2016, 1
        %v2018 = vadd.f32 %v2016, %v2017
        %v2019 = vrcp.pop %v2018
        %v2020 = vmul.f32 %v2011, %v2019
        %v2022 = vsel %vm943, %v2020, 0
        %2024 = vmatprep.subr.mxu0 0.0
        %2025 = vmatpush1.msra.mxu0 0.0
        %2026 = vmatprep.subr.mxu0 0.0
        %2027 = vmatpush1.msra.mxu0 0.0
        %2028 = vmatprep.subr.mxu0 0.0
        %2029 = vmatpush1.msra.mxu0 0.0
        %2030 = vmatprep.subr.mxu0 0.0
        %2031 = vmatpush1.msra.mxu0 0.0
        %2032 = vmatprep.subr.mxu0 0.0
        %2033 = vmatpush1.msra.mxu0 0.0
        %2034 = vmatprep.subr.mxu0 0.0
        %2035 = vmatpush1.msra.mxu0 0.0
        %2036 = vmatprep.subr.mxu0 0.0
        %2037 = vmatpush1.msra.mxu0 0.0
        %2038 = vmatprep.subr.mxu0 0.0
        %2039 = vmatpush1.msra.mxu0 0.0
        %2040 = vmatprep.subr.mxu0 0.0
        %2041 = vmatpush1.msra.mxu0 0.0
        %2042 = vmatprep.subr.mxu0 0.0
        %2043 = vmatpush1.msra.mxu0 0.0
        %2044 = vmatprep.subr.mxu0 0.0
        %2045 = vmatpush1.msra.mxu0 0.0
        %2046 = vmatprep.subr.mxu0 0.0
        %2047 = vmatpush1.msra.mxu0 0.0
        %2048 = vmatprep.subr.mxu0 0.0
        %2049 = vmatpush1.msra.mxu0 0.0
        %2050 = vmatprep.subr.mxu0 0.0
        %2051 = vmatpush1.msra.mxu0 0.0
        %2052 = vmatprep.subr.mxu0 0.0
        %2053 = vmatpush1.msra.mxu0 %v1749
        %2054 = vmatprep.subr.mxu0 0.0
        %2055 = vmatpush1.msra.mxu0 %v1919
        %2056 = vmatprep.subr.mxu0 0.0
        %2057 = vmatpush2.msra.mxu0 0.0
        %2058 = vmatprep.subr.mxu0 0.0
        %2059 = vmatpush2.msra.mxu0 0.0
        %2060 = vmatprep.subr.mxu0 0.0
        %2061 = vmatpush2.msra.mxu0 0.0
        %2062 = vmatprep.subr.mxu0 0.0
        %2063 = vmatpush2.msra.mxu0 0.0
        %2064 = vmatprep.subr.mxu0 0.0
        %2065 = vmatpush2.msra.mxu0 0.0
        %2066 = vmatprep.subr.mxu0 0.0
        %2067 = vmatpush2.msra.mxu0 0.0
        %2068 = vmatprep.subr.mxu0 0.0
        %2069 = vmatpush2.msra.mxu0 0.0
        %2070 = vmatprep.subr.mxu0 0.0
        %2071 = vmatpush2.msra.mxu0 0.0
        %2072 = vmatprep.subr.mxu0 0.0
        %2073 = vmatpush2.msra.mxu0 0.0
        %2074 = vmatprep.subr.mxu0 0.0
        %2075 = vmatpush2.msra.mxu0 0.0
        %2076 = vmatprep.subr.mxu0 0.0
        %2077 = vmatpush2.msra.mxu0 0.0
        %2078 = vmatprep.subr.mxu0 0.0
        %2079 = vmatpush2.msra.mxu0 0.0
        %2080 = vmatprep.subr.mxu0 0.0
        %2081 = vmatpush2.msra.mxu0 0.0
        %2082 = vmatprep.subr.mxu0 0.0
        %2083 = vmatpush2.msra.mxu0 0.0
        %2084 = vmatprep.subr.mxu0 0.0
        %2085 = vmatpush2.msra.mxu0 0.0
        %2086 = vmatprep.subr.mxu0 0.0
        %2087 = vmatpush2.msra.mxu0 0.0
        %2088 = vmatprep.mubr.f32.mxu0 0.0
        %2089 = vmatmul.mubr.f32.gmra.mxu0 %v2022
        %v2090 = vpop.f32.mrf.mxu0
        %v2091 = vadd.f32 0.0, %v2090
        %v2092 = vpop.f32.mrf.mxu0
        %2093 = vdwg.mxu0
        %2094 = vst.msk [vmem:[%s500] sm:$0xff] %vm943, %v2001
        %2095 = vst.msk [vmem:[%s507] sm:$0xff] %vm536, %v2091
        %s2096 = sand.u32 %s265, 1
        %s2097 = scalar_lea.sflag [#allocation4], %s2096
        %s2098 = sand.u32 %s265, 1
        %s2099 = smul.addr %s2098, 8
        %s2100 = scalar_lea.vmem [#allocation13], %s2099
        %s2101 = sand.u32 %s291, 1
        %s2102 = scalar_lea.sflag [#allocation15], %s2101
        %s2103 = sand.u32 %s291, 1
        %s2104 = smul.addr %s2103, 8
        %s2105 = scalar_lea.vmem [#allocation14], %s2104
        // Predicated region
        $region85: #{_interaction_encoder.1} parent=59 // pred_check
          %p2106 = pneg %p275
        $region86: #{_interaction_encoder.1} parent=59 // pred_check_branch
          %2108 = sbr.rel (%p2106) target = $region88
        $region87: #{_interaction_encoder.1} parent=59 // pred_region
          %s2110 = ssub.s32 128, 128
          %2111 = vsyncadd %s2097, %s2110
          %s2112 = smul.addr %s37, 128
          %s2113 = scalar_lea.hbm %s10, %s2112
          %s2115 = sshll.u32 %s2100, 4
          %s2116 = int_to_ptr.vmem [resolvable:$true] %s2115
          %2118 = dma.vmem_to_hbm [thread:$0]  %s2116, 128, %s2113, %s2097
        $region88: #{_interaction_encoder.1} parent=59 // pred_fallthru
          _
        // Predicated region
        $region89: #{_interaction_encoder.1} parent=59 // pred_check
          %p2119 = pneg %p301
        $region90: #{_interaction_encoder.1} parent=59 // pred_check_branch
          %2121 = sbr.rel (%p2119) target = $region92
        $region91: #{_interaction_encoder.1} parent=59 // pred_region
          %s2123 = ssub.s32 128, 128
          %2124 = vsyncadd %s2102, %s2123
          %s2125 = smul.addr %s37, 128
          %s2126 = scalar_lea.hbm %s11, %s2125
          %s2128 = sshll.u32 %s2105, 4
          %s2129 = int_to_ptr.vmem [resolvable:$true] %s2128
          %2131 = dma.vmem_to_hbm [thread:$0]  %s2129, 128, %s2126, %s2102
        $region92: #{_interaction_encoder.1} parent=59 // pred_fallthru
          _
      $region60: #{_interaction_encoder.1} parent=5 // pred_fallthru
        _
      %p2132 = scmp.le.s32.totalorder 2, %s32
      // Predicated region
      $region93: #{_interaction_encoder.1} parent=5 // pred_check
        %p2133 = pneg %p2132
      $region94: #{_interaction_encoder.1} parent=5 // pred_check_branch
        %2135 = sbr.rel (%p2133) target = $region96
      $region95: #{_interaction_encoder.1} parent=5 // pred_region
        %s2136 = ssub.s32 %s32, 2
        // Predicated region
        $region97: #{_interaction_encoder.1} parent=95 // pred_check
          %p2137 = pneg %p281
        $region98: #{_interaction_encoder.1} parent=95 // pred_check_branch
          %2139 = sbr.rel (%p2137) target = $region100
        $region99: #{_interaction_encoder.1} parent=95 // pred_region
          %s2140 = sand.u32 %s266, 1
          %s2141 = scalar_lea.sflag [#allocation4], %s2140
          %s2142 = sand.u32 %s266, 1
          %s2143 = smul.addr %s2142, 8
          %s2144 = scalar_lea.vmem [#allocation13], %s2143
          %2145 = dma.done %s2141, 128
        $region100: #{_interaction_encoder.1} parent=95 // pred_fallthru
          _
        // Predicated region
        $region101: #{_interaction_encoder.1} parent=95 // pred_check
          %p2146 = pneg %p307
        $region102: #{_interaction_encoder.1} parent=95 // pred_check_branch
          %2148 = sbr.rel (%p2146) target = $region104
        $region103: #{_interaction_encoder.1} parent=95 // pred_region
          %s2149 = sand.u32 %s292, 1
          %s2150 = scalar_lea.sflag [#allocation15], %s2149
          %s2151 = sand.u32 %s292, 1
          %s2152 = smul.addr %s2151, 8
          %s2153 = scalar_lea.vmem [#allocation14], %s2152
          %2154 = dma.done %s2150, 128
        $region104: #{_interaction_encoder.1} parent=95 // pred_fallthru
          _
      $region96: #{_interaction_encoder.1} parent=5 // pred_fallthru
        _
    $region6: #{_interaction_encoder.1} parent=1 // loop_footer
      %s36 = sadd.s32 1, %s32
    $region7: #{_interaction_encoder.1} parent=1 // loop_footer_branch
      %31 = sbr.rel target = $region3
    $region8: #{_interaction_encoder.1} parent=1 // loop_exit
      _
    %2155 = vsyncpa [#allocation3], 1
    %s2156 = scalar_lea.sflag [#allocation3], 1
    %2157 = vsyncpa %s2156, 1
    %2158 = vsyncpa [#allocation6], 1
    %s2159 = scalar_lea.sflag [#allocation6], 1
    %2160 = vsyncpa %s2159, 1
    %2161 = vsyncpa [#allocation9], 1
    %2162 = vsyncpa [#allocation12], 1
    %2163 = vsyncpa [#allocation4], 1
    %s2164 = scalar_lea.sflag [#allocation4], 1
    %2165 = vsyncpa %s2164, 1
    %2166 = vsyncpa [#allocation15], 1
    %s2167 = scalar_lea.sflag [#allocation15], 1
    %2168 = vsyncpa %s2167, 1

</llo_original>
